<compile_context>
chip_gen: v7x
topology: tpu7x:2x2x1
jax: 0.10.0
libtpu: 0.0.40
codegen_flags: <defaults>
</compile_context>

<pallas_src>
import functools

import jax
import jax.numpy as jnp
from jax.experimental import pallas as pl
from jax.experimental.pallas import tpu as pltpu

_NEG_LARGE = -1e30   # finite "minus infinity" (avoids inf - inf -> NaN)
_LANE = 128
_SUBLANE = 8


def _round_up(x, m):
    return (x + m - 1) // m * m


def _mm(a, b, compute_dtype):
    # MXU matmul with optional low-precision operands, f32 accumulation.
    return jnp.dot(a.astype(compute_dtype), b.astype(compute_dtype),
                   preferred_element_type=jnp.float32)


def _global_attention_kernel(
    x_ref, batch_ref,
    wg1_ref, bg1_ref, wg2_ref, bg2_ref,     # gate_nn: Linear(D,H) -> ReLU -> Linear(H,1)
    wn1_ref, bn1_ref, wn2_ref, bn2_ref,     # nn:      Linear(D,H) -> ReLU -> Linear(H,Dout)
    out_ref, gate_ref,
    m_ref, l_ref,
    *, compute_dtype,
):
    p = pl.program_id(0)          # phase: 0 = segment stats, 1 = gate + scatter
    t = pl.program_id(1)          # node tile index

    x = x_ref[...]                                    # (T, D) f32
    seg = batch_ref[...]                              # (T, 1) int32
    tile = x.shape[0]
    n_seg = m_ref.shape[1]

    # One-hot segment membership (T, G) — exact gather/scatter matrix since
    # every node belongs to exactly one segment (padded nodes belong to none).
    seg_iota = jax.lax.broadcasted_iota(jnp.int32, (tile, n_seg), 1)
    member = seg_iota == seg                          # bool (T, G)
    onehot = member.astype(jnp.float32)

    # gate_nn: Linear -> ReLU -> (row-weight dot) -> (T, 1) logits.
    g_h = jnp.maximum(_mm(x, wg1_ref[...], compute_dtype) + bg1_ref[...], 0.0)
    z = jnp.sum(g_h * wg2_ref[...], axis=1, keepdims=True) + bg2_ref[...]   # (T, 1)

    @pl.when(jnp.logical_and(p == 0, t == 0))
    def _init():
        m_ref[...] = jnp.full_like(m_ref, _NEG_LARGE)
        l_ref[...] = jnp.zeros_like(l_ref)
        out_ref[...] = jnp.zeros_like(out_ref)

    @pl.when(p == 0)
    def _phase_stats():
        # Streaming per-segment max / denominator with flash-style rescale.
        masked = jnp.where(member, z, _NEG_LARGE)               # (T, G)
        tile_max = jnp.max(masked, axis=0, keepdims=True)       # (1, G)
        m_old = m_ref[...]
        m_new = jnp.maximum(m_old, tile_max)
        m_gathered = jnp.sum(onehot * m_new, axis=1, keepdims=True)   # (T, 1)
        e = jnp.exp(z - m_gathered)
        tile_sum = jnp.sum(onehot * e, axis=0, keepdims=True)          # (1, G)
        l_ref[...] = l_ref[...] * jnp.exp(m_old - m_new) + tile_sum
        m_ref[...] = m_new

    @pl.when(p == 1)
    def _phase_scatter():
        m = m_ref[...]
        l = l_ref[...]
        inv_l = jnp.where(l > 0, 1.0 / l, 0.0)                          # (1, G)
        m_gathered = jnp.sum(onehot * m, axis=1, keepdims=True)         # (T, 1)
        inv_gathered = jnp.sum(onehot * inv_l, axis=1, keepdims=True)   # (T, 1)
        gate = jnp.exp(z - m_gathered) * inv_gathered                   # (T, 1)

        # Write this tile's gates into the resident gate output buffer.
        off = pl.multiple_of(t * tile, tile)
        gate_ref[pl.ds(off, tile), :] = gate.astype(gate_ref.dtype)

        # nn: Linear -> ReLU -> Linear  -> (T, D_out_pad)
        n_h = jnp.maximum(_mm(x, wn1_ref[...], compute_dtype) + bn1_ref[...], 0.0)
        h = _mm(n_h, wn2_ref[...], compute_dtype) + bn2_ref[...]

        weighted = (gate * h).astype(compute_dtype)
        # Segment scatter-add: out[g, :] += sum_{n in tile, seg(n)==g} gate_n * h_n
        contrib = jax.lax.dot_general(
            onehot.astype(compute_dtype), weighted,
            dimension_numbers=(((0,), (0,)), ((), ())),
            preferred_element_type=jnp.float32)                          # (G, D_out_pad)
        out_ref[...] += contrib


def global_attention_forward(x, batch, num_graphs, gate_params, nn_params, *,
                             node_tile=128, compute_dtype=jnp.float32,
                             interpret=False):
    """Forward of MyGlobalAttention. Returns (out[num_graphs, D_out], gate[N, 1])."""
    wg1, bg1, wg2, bg2 = gate_params       # (D,H), (H,), (H,1), (1,)
    wn1, bn1, wn2, bn2 = nn_params         # (D,H), (H,), (H,Dout), (Dout,)

    n, d_in = x.shape
    hidden_g = wg1.shape[1]
    hidden_n = wn1.shape[1]
    d_out = wn2.shape[1]

    assert node_tile % _SUBLANE == 0
    n_pad = _round_up(max(n, node_tile), node_tile)
    g_pad = _round_up(max(int(num_graphs), 1), _SUBLANE)
    d_out_pad = _round_up(d_out, _LANE)
    num_tiles = n_pad // node_tile

    f32 = jnp.float32
    x_p = jnp.zeros((n_pad, d_in), f32).at[:n].set(x.astype(f32))
    # Padded nodes get an out-of-range segment id -> they belong to no segment.
    batch_p = jnp.full((n_pad, 1), g_pad, jnp.int32).at[:n, 0].set(batch.astype(jnp.int32))

    wg1_f = wg1.astype(f32)
    bg1_r = bg1.reshape(1, hidden_g).astype(f32)
    wg2_r = wg2.reshape(1, hidden_g).astype(f32)        # row form of (H,1) weight
    bg2_r = bg2.reshape(1, 1).astype(f32)
    wn1_f = wn1.astype(f32)
    bn1_r = bn1.reshape(1, hidden_n).astype(f32)
    wn2_p = jnp.zeros((hidden_n, d_out_pad), f32).at[:, :d_out].set(wn2.astype(f32))
    bn2_p = jnp.zeros((1, d_out_pad), f32).at[0, :d_out].set(bn2.astype(f32))

    grid = (2, num_tiles)
    kernel = functools.partial(_global_attention_kernel, compute_dtype=compute_dtype)

    flops = int(
        2 * 2 * n_pad * (d_in * hidden_g + hidden_g)            # gate_nn (both phases)
        + 2 * n_pad * (d_in * hidden_n + hidden_n * d_out_pad)  # nn
        + 2 * n_pad * g_pad * d_out_pad)                        # segment scatter matmul
    bytes_accessed = int(
        2 * n_pad * d_in * 4 + 2 * n_pad * 4                    # x + batch (two passes)
        + 4 * (d_in * hidden_g + 2 * hidden_g + 1
               + d_in * hidden_n + hidden_n + hidden_n * d_out_pad + d_out_pad)
        + g_pad * d_out_pad * 4 + n_pad * 4)                    # outputs
    cost = pl.CostEstimate(flops=flops, transcendentals=int(3 * n_pad),
                           bytes_accessed=bytes_accessed)

    out_pad, gate_pad = pl.pallas_call(
        kernel,
        out_shape=(
            jax.ShapeDtypeStruct((g_pad, d_out_pad), jnp.float32),   # pooled output
            jax.ShapeDtypeStruct((n_pad, 1), jnp.float32),           # per-node gate
        ),
        grid_spec=pltpu.PrefetchScalarGridSpec(
            num_scalar_prefetch=0,
            grid=grid,
            in_specs=[
                pl.BlockSpec((node_tile, d_in), lambda p, t: (t, 0)),      # x tile
                pl.BlockSpec((node_tile, 1), lambda p, t: (t, 0)),         # batch ids
                pl.BlockSpec((d_in, hidden_g), lambda p, t: (0, 0)),       # gate W1
                pl.BlockSpec((1, hidden_g), lambda p, t: (0, 0)),          # gate b1
                pl.BlockSpec((1, hidden_g), lambda p, t: (0, 0)),          # gate W2 (row)
                pl.BlockSpec((1, 1), lambda p, t: (0, 0)),                 # gate b2
                pl.BlockSpec((d_in, hidden_n), lambda p, t: (0, 0)),       # nn W1
                pl.BlockSpec((1, hidden_n), lambda p, t: (0, 0)),          # nn b1
                pl.BlockSpec((hidden_n, d_out_pad), lambda p, t: (0, 0)),  # nn W2 (padded)
                pl.BlockSpec((1, d_out_pad), lambda p, t: (0, 0)),         # nn b2 (padded)
            ],
            out_specs=[
                pl.BlockSpec((g_pad, d_out_pad), lambda p, t: (0, 0)),     # resident accumulator
                pl.BlockSpec((n_pad, 1), lambda p, t: (0, 0)),             # resident gate buffer
            ],
            scratch_shapes=[
                pltpu.VMEM((1, g_pad), jnp.float32),   # running per-segment max
                pltpu.VMEM((1, g_pad), jnp.float32),   # running per-segment denominator
            ],
        ),
        compiler_params=pltpu.CompilerParams(
            dimension_semantics=("arbitrary", "arbitrary"),
            vmem_limit_bytes=32 * 1024 * 1024,
        ),
        cost_estimate=cost,
        interpret=interpret,
    )(x_p, batch_p, wg1_f, bg1_r, wg2_r, bg2_r, wn1_f, bn1_r, wn2_p, bn2_p)

    out = out_pad[:num_graphs, :d_out]
    gate = gate_pad[:n]
    return out, gate


def init_mlp_params(key, dims):
    """Xavier-normal(gain=sqrt(2)) weights as (in, out); zero biases."""
    params = []
    gain = 2.0 ** 0.5
    for fan_in, fan_out in zip(dims[:-1], dims[1:]):
        key, wk = jax.random.split(key)
        std = gain * (2.0 / (fan_in + fan_out)) ** 0.5
        w = std * jax.random.normal(wk, (fan_in, fan_out), dtype=jnp.float32)
        b = jnp.zeros((fan_out,), dtype=jnp.float32)
        params += [w, b]
    return key, tuple(params)


def reference_global_attention(x, batch, num_graphs, gate_params, nn_params):
    def mlp2(v, p):
        w1, b1, w2, b2 = p
        h = jnp.maximum(v @ w1 + b1, 0.0)
        return h @ w2 + b2

    z = mlp2(x, gate_params)[:, 0]                                  # (N,)
    h = mlp2(x, nn_params)                                          # (N, D_out)
    seg_max = jax.ops.segment_max(z, batch, num_segments=num_graphs)
    e = jnp.exp(z - seg_max[batch])
    denom = jax.ops.segment_sum(e, batch, num_segments=num_graphs)
    gate = e / denom[batch]
    out = jax.ops.segment_sum(gate[:, None] * h, batch, num_segments=num_graphs)
    return out, gate[:, None]


if __name__ == "__main__":
    key = jax.random.PRNGKey(0)

    num_nodes, in_channels, hidden, out_channels = 300, 32, 32, 16
    num_graphs = 5
    sizes = (70, 50, 100, 40, 40)                      # nodes per graph (sums to 300)
    batch = jnp.concatenate(
        [jnp.full((s,), g, dtype=jnp.int32) for g, s in enumerate(sizes)])

    key, kx = jax.random.split(key)
    x = jax.random.normal(kx, (num_nodes, in_channels), dtype=jnp.float32)

    key, gate_params = init_mlp_params(key, (in_channels, hidden, 1))
    key, nn_params = init_mlp_params(key, (in_channels, hidden, out_channels))

    out, gate = global_attention_forward(
        x, batch, num_graphs, gate_params, nn_params, node_tile=128)
    out, gate = jax.block_until_ready((out, gate))

    ref_out, ref_gate = reference_global_attention(
        x, batch, num_graphs, gate_params, nn_params)

    assert out.shape == (num_graphs, out_channels)
    assert gate.shape == (num_nodes, 1)
    assert jnp.allclose(out, ref_out, atol=2e-3, rtol=2e-3), "out mismatch vs reference"
    assert jnp.allclose(gate, ref_gate, atol=2e-3, rtol=2e-3), "gate mismatch vs reference"
    # gates form a proper softmax per graph
    gate_sums = jax.ops.segment_sum(gate[:, 0], batch, num_segments=num_graphs)
    assert jnp.allclose(gate_sums, jnp.ones((num_graphs,), jnp.float32), atol=1e-3)

    print("KERNEL_OK")
</pallas_src>

<mosaic_0001>
module attributes {stable_mosaic.version = 11 : i64} {
  func.func @_global_attention_kernel(%arg0: i32, %arg1: i32, %arg2: memref<128x32xf32, #tpu.memory_space<vmem>>, %arg3: memref<128x1xi32, #tpu.memory_space<vmem>>, %arg4: memref<32x32xf32, #tpu.memory_space<vmem>>, %arg5: memref<1x32xf32, #tpu.memory_space<vmem>>, %arg6: memref<1x32xf32, #tpu.memory_space<vmem>>, %arg7: memref<1x1xf32, #tpu.memory_space<vmem>>, %arg8: memref<32x32xf32, #tpu.memory_space<vmem>>, %arg9: memref<1x32xf32, #tpu.memory_space<vmem>>, %arg10: memref<32x128xf32, #tpu.memory_space<vmem>>, %arg11: memref<1x128xf32, #tpu.memory_space<vmem>>, %arg12: memref<8x128xf32, #tpu.memory_space<vmem>>, %arg13: memref<384x1xf32, #tpu.memory_space<vmem>>, %arg14: memref<1x8xf32, #tpu.memory_space<vmem>>, %arg15: memref<1x8xf32, #tpu.memory_space<vmem>>) attributes {dimension_semantics = [#tpu.dimension_semantics<arbitrary>, #tpu.dimension_semantics<arbitrary>], iteration_bounds = array<i64: 2, 3>, scalar_prefetch = 0 : i64, scratch_operands = 2 : i64, tpu.core_type = #tpu.core_type<tc>, window_params = [{transform_indices = @transform_0, window_bounds = array<i64: 128, 32>}, {transform_indices = @transform_1, window_bounds = array<i64: 128, 1>}, {pipeline_mode = #tpu.pipeline_mode<synchronous>, transform_indices = @transform_2, window_bounds = array<i64: 32, 32>}, {pipeline_mode = #tpu.pipeline_mode<synchronous>, transform_indices = @transform_3, window_bounds = array<i64: 1, 32>}, {pipeline_mode = #tpu.pipeline_mode<synchronous>, transform_indices = @transform_4, window_bounds = array<i64: 1, 32>}, {pipeline_mode = #tpu.pipeline_mode<synchronous>, transform_indices = @transform_5, window_bounds = array<i64: 1, 1>}, {pipeline_mode = #tpu.pipeline_mode<synchronous>, transform_indices = @transform_6, window_bounds = array<i64: 32, 32>}, {pipeline_mode = #tpu.pipeline_mode<synchronous>, transform_indices = @transform_7, window_bounds = array<i64: 1, 32>}, {pipeline_mode = #tpu.pipeline_mode<synchronous>, transform_indices = @transform_8, window_bounds = array<i64: 32, 128>}, {pipeline_mode = #tpu.pipeline_mode<synchronous>, transform_indices = @transform_9, window_bounds = array<i64: 1, 128>}, {pipeline_mode = #tpu.pipeline_mode<synchronous>, transform_indices = @transform_10, window_bounds = array<i64: 8, 128>}, {pipeline_mode = #tpu.pipeline_mode<synchronous>, transform_indices = @transform_11, window_bounds = array<i64: 384, 1>}]} {
    %c0 = arith.constant 0 : index
    %c0_0 = arith.constant 0 : index
    %0 = vector.load %arg2[%c0, %c0_0] : memref<128x32xf32, #tpu.memory_space<vmem>>, vector<128x32xf32>
    %c0_1 = arith.constant 0 : index
    %c0_2 = arith.constant 0 : index
    %1 = vector.load %arg3[%c0_1, %c0_2] : memref<128x1xi32, #tpu.memory_space<vmem>>, vector<128x1xi32>
    %2 = tpu.iota {dimensions = array<i32: 1>} : vector<128x8xi32>
    %3 = vector.broadcast %1 : vector<128x1xi32> to vector<128x8xi32>
    %4 = arith.cmpi eq, %2, %3 : vector<128x8xi32>
    %5 = arith.extui %4 : vector<128x8xi1> to vector<128x8xi32>
    %6 = arith.sitofp %5 : vector<128x8xi32> to vector<128x8xf32>
    %c0_3 = arith.constant 0 : index
    %c0_4 = arith.constant 0 : index
    %7 = vector.load %arg4[%c0_3, %c0_4] : memref<32x32xf32, #tpu.memory_space<vmem>>, vector<32x32xf32>
    %cst = arith.constant dense<0.000000e+00> : vector<128x32xf32>
    %8 = tpu.matmul %0, %7, %cst {dimension_numbers = #tpu.dot_dimension_numbers<[1], [0], [0], [1], [0, 0, 1, 1], [], []>} : vector<128x32xf32>, vector<32x32xf32>, vector<128x32xf32> -> vector<128x32xf32>
    %c0_5 = arith.constant 0 : index
    %c0_6 = arith.constant 0 : index
    %9 = vector.load %arg5[%c0_5, %c0_6] : memref<1x32xf32, #tpu.memory_space<vmem>>, vector<1x32xf32>
    %10 = vector.broadcast %9 : vector<1x32xf32> to vector<128x32xf32>
    %11 = arith.addf %8, %10 : vector<128x32xf32>
    %cst_7 = arith.constant 0.000000e+00 : f32
    %12 = vector.broadcast %cst_7 : f32 to vector<128x32xf32>
    %13 = arith.maximumf %11, %12 : vector<128x32xf32>
    %c0_8 = arith.constant 0 : index
    %c0_9 = arith.constant 0 : index
    %14 = vector.load %arg6[%c0_8, %c0_9] : memref<1x32xf32, #tpu.memory_space<vmem>>, vector<1x32xf32>
    %15 = vector.broadcast %14 : vector<1x32xf32> to vector<128x32xf32>
    %16 = arith.mulf %13, %15 : vector<128x32xf32>
    %cst_10 = arith.constant dense<0.000000e+00> : vector<128xf32>
    %17 = vector.multi_reduction <add>, %16, %cst_10 [1] : vector<128x32xf32> to vector<128xf32>
    %18 = vector.shape_cast %17 : vector<128xf32> to vector<128x1xf32>
    %c0_11 = arith.constant 0 : index
    %c0_12 = arith.constant 0 : index
    %19 = vector.load %arg7[%c0_11, %c0_12] : memref<1x1xf32, #tpu.memory_space<vmem>>, vector<1x1xf32>
    %20 = vector.broadcast %19 : vector<1x1xf32> to vector<128x1xf32>
    %21 = arith.addf %18, %20 : vector<128x1xf32>
    %c0_i32 = arith.constant 0 : i32
    %22 = arith.cmpi eq, %arg0, %c0_i32 : i32
    %c0_i32_13 = arith.constant 0 : i32
    %23 = arith.cmpi eq, %arg1, %c0_i32_13 : i32
    %24 = arith.andi %22, %23 : i1
    %25 = arith.extui %24 : i1 to i32
    %c0_i32_14 = arith.constant 0 : i32
    %26 = arith.cmpi ne, %25, %c0_i32_14 : i32
    scf.if %26 {
      %cst_18 = arith.constant -1.000000e+30 : f32
      %33 = vector.broadcast %cst_18 : f32 to vector<1x8xf32>
      %c0_19 = arith.constant 0 : index
      %c0_20 = arith.constant 0 : index
      %34 = vector.load %arg14[%c0_19, %c0_20] : memref<1x8xf32, #tpu.memory_space<vmem>>, vector<1x8xf32>
      tpu.vector_store %arg14[%c0_19, %c0_20], %33 {strides = array<i32>} : memref<1x8xf32, #tpu.memory_space<vmem>>, vector<1x8xf32>,
      %cst_21 = arith.constant 0.000000e+00 : f32
      %35 = vector.broadcast %cst_21 : f32 to vector<1x8xf32>
      %c0_22 = arith.constant 0 : index
      %c0_23 = arith.constant 0 : index
      %36 = vector.load %arg15[%c0_22, %c0_23] : memref<1x8xf32, #tpu.memory_space<vmem>>, vector<1x8xf32>
      tpu.vector_store %arg15[%c0_22, %c0_23], %35 {strides = array<i32>} : memref<1x8xf32, #tpu.memory_space<vmem>>, vector<1x8xf32>,
      %cst_24 = arith.constant 0.000000e+00 : f32
      %37 = vector.broadcast %cst_24 : f32 to vector<8x128xf32>
      %c0_25 = arith.constant 0 : index
      %c0_26 = arith.constant 0 : index
      %38 = vector.load %arg12[%c0_25, %c0_26] : memref<8x128xf32, #tpu.memory_space<vmem>>, vector<8x128xf32>
      tpu.vector_store %arg12[%c0_25, %c0_26], %37 {strides = array<i32>} : memref<8x128xf32, #tpu.memory_space<vmem>>, vector<8x128xf32>,
    } else {
    }
    %c0_i32_15 = arith.constant 0 : i32
    %27 = arith.cmpi eq, %arg0, %c0_i32_15 : i32
    %28 = arith.extui %27 : i1 to i32
    %c0_i32_16 = arith.constant 0 : i32
    %29 = arith.cmpi ne, %28, %c0_i32_16 : i32
    scf.if %29 {
      %cst_18 = arith.constant -1.000000e+30 : f32
      %33 = vector.shape_cast %21 : vector<128x1xf32> to vector<128x1xf32>
      %34 = vector.broadcast %33 : vector<128x1xf32> to vector<128x8xf32>
      %35 = vector.broadcast %cst_18 : f32 to vector<128x8xf32>
      %36 = arith.select %4, %34, %35 : vector<128x8xi1>, vector<128x8xf32>
      %cst_19 = arith.constant dense<0xFF800000> : vector<8xf32>
      %37 = vector.multi_reduction <maximumf>, %36, %cst_19 [0] : vector<128x8xf32> to vector<8xf32>
      %38 = vector.shape_cast %37 : vector<8xf32> to vector<1x8xf32>
      %c0_20 = arith.constant 0 : index
      %c0_21 = arith.constant 0 : index
      %39 = vector.load %arg14[%c0_20, %c0_21] : memref<1x8xf32, #tpu.memory_space<vmem>>, vector<1x8xf32>
      %40 = arith.maximumf %39, %38 : vector<1x8xf32>
      %41 = vector.broadcast %40 : vector<1x8xf32> to vector<128x8xf32>
      %42 = arith.mulf %6, %41 : vector<128x8xf32>
      %cst_22 = arith.constant dense<0.000000e+00> : vector<128xf32>
      %43 = vector.multi_reduction <add>, %42, %cst_22 [1] : vector<128x8xf32> to vector<128xf32>
      %44 = vector.shape_cast %43 : vector<128xf32> to vector<128x1xf32>
      %45 = arith.subf %21, %44 : vector<128x1xf32>
      %46 = math.exp %45 : vector<128x1xf32>
      %47 = vector.broadcast %46 : vector<128x1xf32> to vector<128x8xf32>
      %48 = arith.mulf %6, %47 : vector<128x8xf32>
      %cst_23 = arith.constant dense<0.000000e+00> : vector<8xf32>
      %49 = vector.multi_reduction <add>, %48, %cst_23 [0] : vector<128x8xf32> to vector<8xf32>
      %50 = vector.shape_cast %49 : vector<8xf32> to vector<1x8xf32>
      %c0_24 = arith.constant 0 : index
      %c0_25 = arith.constant 0 : index
      %51 = vector.load %arg15[%c0_24, %c0_25] : memref<1x8xf32, #tpu.memory_space<vmem>>, vector<1x8xf32>
      %52 = arith.subf %39, %40 : vector<1x8xf32>
      %53 = math.exp %52 : vector<1x8xf32>
      %54 = arith.mulf %51, %53 : vector<1x8xf32>
      %55 = arith.addf %54, %50 : vector<1x8xf32>
      %c0_26 = arith.constant 0 : index
      %c0_27 = arith.constant 0 : index
      %56 = vector.load %arg15[%c0_26, %c0_27] : memref<1x8xf32, #tpu.memory_space<vmem>>, vector<1x8xf32>
      tpu.vector_store %arg15[%c0_26, %c0_27], %55 {strides = array<i32>} : memref<1x8xf32, #tpu.memory_space<vmem>>, vector<1x8xf32>,
      %c0_28 = arith.constant 0 : index
      %c0_29 = arith.constant 0 : index
      %57 = vector.load %arg14[%c0_28, %c0_29] : memref<1x8xf32, #tpu.memory_space<vmem>>, vector<1x8xf32>
      tpu.vector_store %arg14[%c0_28, %c0_29], %40 {strides = array<i32>} : memref<1x8xf32, #tpu.memory_space<vmem>>, vector<1x8xf32>,
    } else {
    }
    %c1_i32 = arith.constant 1 : i32
    %30 = arith.cmpi eq, %arg0, %c1_i32 : i32
    %31 = arith.extui %30 : i1 to i32
    %c0_i32_17 = arith.constant 0 : i32
    %32 = arith.cmpi ne, %31, %c0_i32_17 : i32
    scf.if %32 {
      %c0_18 = arith.constant 0 : index
      %c0_19 = arith.constant 0 : index
      %33 = vector.load %arg14[%c0_18, %c0_19] : memref<1x8xf32, #tpu.memory_space<vmem>>, vector<1x8xf32>
      %c0_20 = arith.constant 0 : index
      %c0_21 = arith.constant 0 : index
      %34 = vector.load %arg15[%c0_20, %c0_21] : memref<1x8xf32, #tpu.memory_space<vmem>>, vector<1x8xf32>
      %cst_22 = arith.constant 0.000000e+00 : f32
      %35 = vector.broadcast %cst_22 : f32 to vector<1x8xf32>
      %36 = arith.cmpf ogt, %34, %35 : vector<1x8xf32>
      %cst_23 = arith.constant 1.000000e+00 : f32
      %37 = vector.broadcast %cst_23 : f32 to vector<1x8xf32>
      %38 = arith.divf %37, %34 : vector<1x8xf32>
      %cst_24 = arith.constant 0.000000e+00 : f32
      %39 = vector.broadcast %cst_24 : f32 to vector<1x8xf32>
      %40 = arith.select %36, %38, %39 : vector<1x8xi1>, vector<1x8xf32>
      %41 = vector.broadcast %33 : vector<1x8xf32> to vector<128x8xf32>
      %42 = arith.mulf %6, %41 : vector<128x8xf32>
      %cst_25 = arith.constant dense<0.000000e+00> : vector<128xf32>
      %43 = vector.multi_reduction <add>, %42, %cst_25 [1] : vector<128x8xf32> to vector<128xf32>
      %44 = vector.shape_cast %43 : vector<128xf32> to vector<128x1xf32>
      %45 = vector.broadcast %40 : vector<1x8xf32> to vector<128x8xf32>
      %46 = arith.mulf %6, %45 : vector<128x8xf32>
      %cst_26 = arith.constant dense<0.000000e+00> : vector<128xf32>
      %47 = vector.multi_reduction <add>, %46, %cst_26 [1] : vector<128x8xf32> to vector<128xf32>
      %48 = vector.shape_cast %47 : vector<128xf32> to vector<128x1xf32>
      %49 = arith.subf %21, %44 : vector<128x1xf32>
      %50 = math.exp %49 : vector<128x1xf32>
      %51 = arith.mulf %50, %48 : vector<128x1xf32>
      %c128_i32 = arith.constant 128 : i32
      %52 = arith.muli %arg1, %c128_i32 : i32
      %53 = tpu.assume_multiple %52, 128 : i32
      %54 = arith.index_cast %53 : i32 to index
      %c0_27 = arith.constant 0 : index
      %55 = vector.load %arg13[%54, %c0_27] : memref<384x1xf32, #tpu.memory_space<vmem>>, vector<128x1xf32>
      tpu.vector_store %arg13[%54, %c0_27], %51 {strides = array<i32>} : memref<384x1xf32, #tpu.memory_space<vmem>>, vector<128x1xf32>,
      %c0_28 = arith.constant 0 : index
      %c0_29 = arith.constant 0 : index
      %56 = vector.load %arg8[%c0_28, %c0_29] : memref<32x32xf32, #tpu.memory_space<vmem>>, vector<32x32xf32>
      %cst_30 = arith.constant dense<0.000000e+00> : vector<128x32xf32>
      %57 = tpu.matmul %0, %56, %cst_30 {dimension_numbers = #tpu.dot_dimension_numbers<[1], [0], [0], [1], [0, 0, 1, 1], [], []>} : vector<128x32xf32>, vector<32x32xf32>, vector<128x32xf32> -> vector<128x32xf32>
      %c0_31 = arith.constant 0 : index
      %c0_32 = arith.constant 0 : index
      %58 = vector.load %arg9[%c0_31, %c0_32] : memref<1x32xf32, #tpu.memory_space<vmem>>, vector<1x32xf32>
      %59 = vector.broadcast %58 : vector<1x32xf32> to vector<128x32xf32>
      %60 = arith.addf %57, %59 : vector<128x32xf32>
      %cst_33 = arith.constant 0.000000e+00 : f32
      %61 = vector.broadcast %cst_33 : f32 to vector<128x32xf32>
      %62 = arith.maximumf %60, %61 : vector<128x32xf32>
      %c0_34 = arith.constant 0 : index
      %c0_35 = arith.constant 0 : index
      %63 = vector.load %arg10[%c0_34, %c0_35] : memref<32x128xf32, #tpu.memory_space<vmem>>, vector<32x128xf32>
      %cst_36 = arith.constant dense<0.000000e+00> : vector<128x128xf32>
      %64 = tpu.matmul %62, %63, %cst_36 {dimension_numbers = #tpu.dot_dimension_numbers<[1], [0], [0], [1], [0, 0, 1, 1], [], []>} : vector<128x32xf32>, vector<32x128xf32>, vector<128x128xf32> -> vector<128x128xf32>
      %c0_37 = arith.constant 0 : index
      %c0_38 = arith.constant 0 : index
      %65 = vector.load %arg11[%c0_37, %c0_38] : memref<1x128xf32, #tpu.memory_space<vmem>>, vector<1x128xf32>
      %66 = vector.broadcast %65 : vector<1x128xf32> to vector<128x128xf32>
      %67 = arith.addf %64, %66 : vector<128x128xf32>
      %68 = vector.broadcast %51 : vector<128x1xf32> to vector<128x128xf32>
      %69 = arith.mulf %68, %67 : vector<128x128xf32>
      %cst_39 = arith.constant dense<0.000000e+00> : vector<8x128xf32>
      %70 = tpu.matmul %6, %69, %cst_39 {dimension_numbers = #tpu.dot_dimension_numbers<[0], [0], [1], [1], [0, 1, 1, 1], [], []>} : vector<128x8xf32>, vector<128x128xf32>, vector<8x128xf32> -> vector<8x128xf32>
      %c0_40 = arith.constant 0 : index
      %c0_41 = arith.constant 0 : index
      %71 = vector.load %arg12[%c0_40, %c0_41] : memref<8x128xf32, #tpu.memory_space<vmem>>, vector<8x128xf32>
      %72 = arith.addf %71, %70 : vector<8x128xf32>
      %c0_42 = arith.constant 0 : index
      %c0_43 = arith.constant 0 : index
      %73 = vector.load %arg12[%c0_42, %c0_43] : memref<8x128xf32, #tpu.memory_space<vmem>>, vector<8x128xf32>
      tpu.vector_store %arg12[%c0_42, %c0_43], %72 {strides = array<i32>} : memref<8x128xf32, #tpu.memory_space<vmem>>, vector<8x128xf32>,
    } else {
    }
    return
  }
  func.func @transform_0(%arg0: i32, %arg1: i32) -> (i32, i32) {
    %c0_i32 = arith.constant 0 : i32
    %c0_i32_0 = arith.constant 0 : i32
    return %arg1, %c0_i32 : i32, i32
  }
  func.func @transform_1(%arg0: i32, %arg1: i32) -> (i32, i32) {
    %c0_i32 = arith.constant 0 : i32
    %c0_i32_0 = arith.constant 0 : i32
    return %arg1, %c0_i32 : i32, i32
  }
  func.func @transform_2(%arg0: i32, %arg1: i32) -> (i32, i32) {
    %c0_i32 = arith.constant 0 : i32
    %c0_i32_0 = arith.constant 0 : i32
    %c0_i32_1 = arith.constant 0 : i32
    return %c0_i32, %c0_i32_0 : i32, i32
  }
  func.func @transform_3(%arg0: i32, %arg1: i32) -> (i32, i32) {
    %c0_i32 = arith.constant 0 : i32
    %c0_i32_0 = arith.constant 0 : i32
    %c0_i32_1 = arith.constant 0 : i32
    return %c0_i32, %c0_i32_0 : i32, i32
  }
  func.func @transform_4(%arg0: i32, %arg1: i32) -> (i32, i32) {
    %c0_i32 = arith.constant 0 : i32
    %c0_i32_0 = arith.constant 0 : i32
    %c0_i32_1 = arith.constant 0 : i32
    return %c0_i32, %c0_i32_0 : i32, i32
  }
  func.func @transform_5(%arg0: i32, %arg1: i32) -> (i32, i32) {
    %c0_i32 = arith.constant 0 : i32
    %c0_i32_0 = arith.constant 0 : i32
    %c0_i32_1 = arith.constant 0 : i32
    return %c0_i32, %c0_i32_0 : i32, i32
  }
  func.func @transform_6(%arg0: i32, %arg1: i32) -> (i32, i32) {
    %c0_i32 = arith.constant 0 : i32
    %c0_i32_0 = arith.constant 0 : i32
    %c0_i32_1 = arith.constant 0 : i32
    return %c0_i32, %c0_i32_0 : i32, i32
  }
  func.func @transform_7(%arg0: i32, %arg1: i32) -> (i32, i32) {
    %c0_i32 = arith.constant 0 : i32
    %c0_i32_0 = arith.constant 0 : i32
    %c0_i32_1 = arith.constant 0 : i32
    return %c0_i32, %c0_i32_0 : i32, i32
  }
  func.func @transform_8(%arg0: i32, %arg1: i32) -> (i32, i32) {
    %c0_i32 = arith.constant 0 : i32
    %c0_i32_0 = arith.constant 0 : i32
    %c0_i32_1 = arith.constant 0 : i32
    return %c0_i32, %c0_i32_0 : i32, i32
  }
  func.func @transform_9(%arg0: i32, %arg1: i32) -> (i32, i32) {
    %c0_i32 = arith.constant 0 : i32
    %c0_i32_0 = arith.constant 0 : i32
    %c0_i32_1 = arith.constant 0 : i32
    return %c0_i32, %c0_i32_0 : i32, i32
  }
  func.func @transform_10(%arg0: i32, %arg1: i32) -> (i32, i32) {
    %c0_i32 = arith.constant 0 : i32
    %c0_i32_0 = arith.constant 0 : i32
    %c0_i32_1 = arith.constant 0 : i32
    return %c0_i32, %c0_i32_0 : i32, i32
  }
  func.func @transform_11(%arg0: i32, %arg1: i32) -> (i32, i32) {
    %c0_i32 = arith.constant 0 : i32
    %c0_i32_0 = arith.constant 0 : i32
    %c0_i32_1 = arith.constant 0 : i32
    return %c0_i32, %c0_i32_0 : i32, i32
  }
}

</mosaic_0001>

<llo_original>
// kernel: tpu_custom_call.1
$region0: #{tpu_custom_call.1}
  #allocation0 [shape = 'u32[]', space=smem, size = 0x4, offset = 0x4, fixed_abs, tag = 'smem constant byte address 0x4 - core index']
  #allocation1 [shape = 'u32[144,128]{1,0:T(1,128)}', space=vmem, size = 0x12000, scoped, tag = 'internal scratch']
  #allocation2 [shape = 'f32[1,8]{1,0:T(1,128)}', space=vmem, size = 0x200, scoped, tag = 'scratch operand']
  #allocation3 [shape = 'f32[1,8]{1,0:T(1,128)}', space=vmem, size = 0x200, scoped, tag = 'scratch operand']
  #allocation4 [shape = 'f32[1,1]{1,0:T(1,128)S(1)}', space=vmem, size = 0x200, scoped, tag = 'scoped memory for tpu_custom_call.1']
  %s0 = inlined_call_operand.vmem [shape: f32[384,32], index: 0, kind: input, shape index: {}]
  %s1 = inlined_call_operand.vmem [shape: s32[384,1], index: 1, kind: input, shape index: {}]
  %s2 = inlined_call_operand.vmem [shape: f32[32,32], index: 2, kind: input, shape index: {}]
  %s3 = inlined_call_operand.vmem [shape: f32[1,32], index: 3, kind: input, shape index: {}]
  %s4 = inlined_call_operand.vmem [shape: f32[1,32], index: 4, kind: input, shape index: {}]
  %s5 = inlined_call_operand.<no memory space> [shape: f32[1,1], index: 5, kind: input, shape index: {}]
  %s6 = inlined_call_operand.vmem [shape: f32[32,32], index: 6, kind: input, shape index: {}]
  %s7 = inlined_call_operand.vmem [shape: f32[1,32], index: 7, kind: input, shape index: {}]
  %s8 = inlined_call_operand.vmem [shape: f32[32,128], index: 8, kind: input, shape index: {}]
  %s9 = inlined_call_operand.vmem [shape: f32[1,128], index: 9, kind: input, shape index: {}]
  %s10 = inlined_call_operand.hbm [shape: f32[8,128], index: 10, kind: output, shape index: {0}]
  %s11 = inlined_call_operand.vmem [shape: f32[384,1], index: 11, kind: output, shape index: {1}]
  %12 = xla_tuple %s10, %s11
  %s13 = sld [smem:[#allocation0]]
  $region93: #{tpu_custom_call.1} parent=0
    _
  %s15 = ssub.s32 1, %s13
  %s16 = scalar_select 0, %s15, %s13
  %v17 = vstv %s5
  %18 = vst [vmem:[#allocation4] sm:$0x1] %v17
  $region1: #{tpu_custom_call.1} parent=0
    #allocation5 [shape = 'u8[4096]{0}', space=vmem, size = 0x1000, scoped, tag = 'output window, operand 0, single buffered']
    #allocation6 [shape = 's32[2]{0}', space=sflag, size = 0x8, scoped, tag = 'scoped memory for tpu_custom_call.1']
    %19 = vsyncpa [#allocation6], 0
    loop: start=0, step=1, limit=8
    $region2: #{tpu_custom_call.1} parent=1 // loop_pre_header
      _
    $region3: #{tpu_custom_call.1} parent=1 // loop_header
      %s21 = sphi 0, %s25
      %p22 = scmp.ge.s32.totalorder %s21, 8
      %s28 = sphi 0, %s40
      %s29 = sphi 0, %s36
      %s30 = sphi 0, %s28
      %s31 = sphi 0, %s29
      %s32 = sphi 0, %s30
      %s33 = sphi 0, %s31
      %s43 = sphi 0, %s45
      %s46 = sphi 0, %s43
      %s47 = sphi 0, %s46
      %s63 = sphi 0, %s47
      %s69 = sphi 0, %s71
      %s72 = sphi 0, %s69
      %s73 = sphi 0, %s72
      %s89 = sphi 0, %s73
      %s93 = sphi 0, %s93
      %s95 = sphi 0, %s93
      %s96 = sphi 0, %s95
      %s110 = sphi 0, %s96
      %s114 = sphi 0, %s114
      %s116 = sphi 0, %s114
      %s117 = sphi 0, %s116
      %s131 = sphi 0, %s117
      %s135 = sphi 0, %s135
      %s137 = sphi 0, %s135
      %s138 = sphi 0, %s137
      %s152 = sphi 0, %s138
      %s156 = sphi 0, %s156
      %s158 = sphi 0, %s156
      %s159 = sphi 0, %s158
      %s173 = sphi 0, %s159
      %s177 = sphi 0, %s177
      %s179 = sphi 0, %s177
      %s180 = sphi 0, %s179
      %s194 = sphi 0, %s180
      %s198 = sphi 0, %s198
      %s200 = sphi 0, %s198
      %s201 = sphi 0, %s200
      %s215 = sphi 0, %s201
      %s219 = sphi 0, %s219
      %s221 = sphi 0, %s219
      %s222 = sphi 0, %s221
      %s236 = sphi 0, %s222
      %s240 = sphi 0, %s240
      %s242 = sphi 0, %s240
      %s243 = sphi 0, %s242
      %s257 = sphi 0, %s243
      %s261 = sphi 0, %s261
      %s263 = sphi 0, %s261
      %s264 = sphi 0, %s263
      %s278 = sphi 0, %s264
      %s282 = sphi 0, %s282
      %s284 = sphi 0, %s282
      %s285 = sphi 0, %s284
      %s299 = sphi 0, %s285
    $region4: #{tpu_custom_call.1} parent=1 // loop_header_branch
      %24 = sbr.rel (%p22) target = $region8
    $region5: #{tpu_custom_call.1} parent=1 // loop_body
      %s26 = ssub.s32 %s21, 1
      %s27 = ssub.s32 %s21, 2
      %s34 = sadd.s32 1, %s29
      %p35 = scmp.ge.s32.totalorder %s34, 3
      %s36 = scalar_select %p35, 0, %s34
      %s37 = sadd.s32 1, %s28
      %s38 = scalar_select %p35, %s37, %s28
      %p39 = scmp.ge.s32.totalorder %s38, 2
      %s40 = scalar_select %p39, 0, %s38
      %s41 = ssub.s32 %s29, %s36
      %p42 = scmp.eq.s32.totalorder %s41, 0
      %s44 = sadd.s32 %s43, 1
      %s45 = scalar_select %p42, %s43, %s44
      %p48 = pneg %p42
      %p49 = scmp.eq.s32.totalorder %s21, 5
      %p50 = por %p48, %p49
      %p51 = scmp.ne.s32.totalorder %s43, %s46
      %p52 = scmp.eq.s32.totalorder %s21, 0
      %p53 = por %p51, %p52
      %p54 = scmp.ne.s32.totalorder %s43, %s46
      %p55 = scmp.eq.s32.totalorder %s26, 5
      %p56 = por %p54, %p55
      %p57 = scmp.ne.s32.totalorder %s46, %s47
      %p58 = scmp.eq.s32.totalorder %s26, 0
      %p59 = por %p57, %p58
      %p60 = scmp.ne.s32.totalorder %s46, %s47
      %p61 = scmp.eq.s32.totalorder %s27, 5
      %p62 = por %p60, %p61
      %p64 = scmp.ne.s32.totalorder %s47, %s63
      %p65 = scmp.eq.s32.totalorder %s27, 0
      %p66 = por %p64, %p65
      %s67 = ssub.s32 %s29, %s36
      %p68 = scmp.eq.s32.totalorder %s67, 0
      %s70 = sadd.s32 %s69, 1
      %s71 = scalar_select %p68, %s69, %s70
      %p74 = pneg %p68
      %p75 = scmp.eq.s32.totalorder %s21, 5
      %p76 = por %p74, %p75
      %p77 = scmp.ne.s32.totalorder %s69, %s72
      %p78 = scmp.eq.s32.totalorder %s21, 0
      %p79 = por %p77, %p78
      %p80 = scmp.ne.s32.totalorder %s69, %s72
      %p81 = scmp.eq.s32.totalorder %s26, 5
      %p82 = por %p80, %p81
      %p83 = scmp.ne.s32.totalorder %s72, %s73
      %p84 = scmp.eq.s32.totalorder %s26, 0
      %p85 = por %p83, %p84
      %p86 = scmp.ne.s32.totalorder %s72, %s73
      %p87 = scmp.eq.s32.totalorder %s27, 5
      %p88 = por %p86, %p87
      %p90 = scmp.ne.s32.totalorder %s73, %s89
      %p91 = scmp.eq.s32.totalorder %s27, 0
      %p92 = por %p90, %p91
      %s94 = sadd.s32 %s93, 1
      %p97 = scmp.eq.s32.totalorder %s21, 5
      %p98 = scmp.ne.s32.totalorder %s93, %s95
      %p99 = scmp.eq.s32.totalorder %s21, 0
      %p100 = por %p98, %p99
      %p101 = scmp.ne.s32.totalorder %s93, %s95
      %p102 = scmp.eq.s32.totalorder %s26, 5
      %p103 = por %p101, %p102
      %p104 = scmp.ne.s32.totalorder %s95, %s96
      %p105 = scmp.eq.s32.totalorder %s26, 0
      %p106 = por %p104, %p105
      %p107 = scmp.ne.s32.totalorder %s95, %s96
      %p108 = scmp.eq.s32.totalorder %s27, 5
      %p109 = por %p107, %p108
      %p111 = scmp.ne.s32.totalorder %s96, %s110
      %p112 = scmp.eq.s32.totalorder %s27, 0
      %p113 = por %p111, %p112
      %s115 = sadd.s32 %s114, 1
      %p118 = scmp.eq.s32.totalorder %s21, 5
      %p119 = scmp.ne.s32.totalorder %s114, %s116
      %p120 = scmp.eq.s32.totalorder %s21, 0
      %p121 = por %p119, %p120
      %p122 = scmp.ne.s32.totalorder %s114, %s116
      %p123 = scmp.eq.s32.totalorder %s26, 5
      %p124 = por %p122, %p123
      %p125 = scmp.ne.s32.totalorder %s116, %s117
      %p126 = scmp.eq.s32.totalorder %s26, 0
      %p127 = por %p125, %p126
      %p128 = scmp.ne.s32.totalorder %s116, %s117
      %p129 = scmp.eq.s32.totalorder %s27, 5
      %p130 = por %p128, %p129
      %p132 = scmp.ne.s32.totalorder %s117, %s131
      %p133 = scmp.eq.s32.totalorder %s27, 0
      %p134 = por %p132, %p133
      %s136 = sadd.s32 %s135, 1
      %p139 = scmp.eq.s32.totalorder %s21, 5
      %p140 = scmp.ne.s32.totalorder %s135, %s137
      %p141 = scmp.eq.s32.totalorder %s21, 0
      %p142 = por %p140, %p141
      %p143 = scmp.ne.s32.totalorder %s135, %s137
      %p144 = scmp.eq.s32.totalorder %s26, 5
      %p145 = por %p143, %p144
      %p146 = scmp.ne.s32.totalorder %s137, %s138
      %p147 = scmp.eq.s32.totalorder %s26, 0
      %p148 = por %p146, %p147
      %p149 = scmp.ne.s32.totalorder %s137, %s138
      %p150 = scmp.eq.s32.totalorder %s27, 5
      %p151 = por %p149, %p150
      %p153 = scmp.ne.s32.totalorder %s138, %s152
      %p154 = scmp.eq.s32.totalorder %s27, 0
      %p155 = por %p153, %p154
      %s157 = sadd.s32 %s156, 1
      %p160 = scmp.eq.s32.totalorder %s21, 5
      %p161 = scmp.ne.s32.totalorder %s156, %s158
      %p162 = scmp.eq.s32.totalorder %s21, 0
      %p163 = por %p161, %p162
      %p164 = scmp.ne.s32.totalorder %s156, %s158
      %p165 = scmp.eq.s32.totalorder %s26, 5
      %p166 = por %p164, %p165
      %p167 = scmp.ne.s32.totalorder %s158, %s159
      %p168 = scmp.eq.s32.totalorder %s26, 0
      %p169 = por %p167, %p168
      %p170 = scmp.ne.s32.totalorder %s158, %s159
      %p171 = scmp.eq.s32.totalorder %s27, 5
      %p172 = por %p170, %p171
      %p174 = scmp.ne.s32.totalorder %s159, %s173
      %p175 = scmp.eq.s32.totalorder %s27, 0
      %p176 = por %p174, %p175
      %s178 = sadd.s32 %s177, 1
      %p181 = scmp.eq.s32.totalorder %s21, 5
      %p182 = scmp.ne.s32.totalorder %s177, %s179
      %p183 = scmp.eq.s32.totalorder %s21, 0
      %p184 = por %p182, %p183
      %p185 = scmp.ne.s32.totalorder %s177, %s179
      %p186 = scmp.eq.s32.totalorder %s26, 5
      %p187 = por %p185, %p186
      %p188 = scmp.ne.s32.totalorder %s179, %s180
      %p189 = scmp.eq.s32.totalorder %s26, 0
      %p190 = por %p188, %p189
      %p191 = scmp.ne.s32.totalorder %s179, %s180
      %p192 = scmp.eq.s32.totalorder %s27, 5
      %p193 = por %p191, %p192
      %p195 = scmp.ne.s32.totalorder %s180, %s194
      %p196 = scmp.eq.s32.totalorder %s27, 0
      %p197 = por %p195, %p196
      %s199 = sadd.s32 %s198, 1
      %p202 = scmp.eq.s32.totalorder %s21, 5
      %p203 = scmp.ne.s32.totalorder %s198, %s200
      %p204 = scmp.eq.s32.totalorder %s21, 0
      %p205 = por %p203, %p204
      %p206 = scmp.ne.s32.totalorder %s198, %s200
      %p207 = scmp.eq.s32.totalorder %s26, 5
      %p208 = por %p206, %p207
      %p209 = scmp.ne.s32.totalorder %s200, %s201
      %p210 = scmp.eq.s32.totalorder %s26, 0
      %p211 = por %p209, %p210
      %p212 = scmp.ne.s32.totalorder %s200, %s201
      %p213 = scmp.eq.s32.totalorder %s27, 5
      %p214 = por %p212, %p213
      %p216 = scmp.ne.s32.totalorder %s201, %s215
      %p217 = scmp.eq.s32.totalorder %s27, 0
      %p218 = por %p216, %p217
      %s220 = sadd.s32 %s219, 1
      %p223 = scmp.eq.s32.totalorder %s21, 5
      %p224 = scmp.ne.s32.totalorder %s219, %s221
      %p225 = scmp.eq.s32.totalorder %s21, 0
      %p226 = por %p224, %p225
      %p227 = scmp.ne.s32.totalorder %s219, %s221
      %p228 = scmp.eq.s32.totalorder %s26, 5
      %p229 = por %p227, %p228
      %p230 = scmp.ne.s32.totalorder %s221, %s222
      %p231 = scmp.eq.s32.totalorder %s26, 0
      %p232 = por %p230, %p231
      %p233 = scmp.ne.s32.totalorder %s221, %s222
      %p234 = scmp.eq.s32.totalorder %s27, 5
      %p235 = por %p233, %p234
      %p237 = scmp.ne.s32.totalorder %s222, %s236
      %p238 = scmp.eq.s32.totalorder %s27, 0
      %p239 = por %p237, %p238
      %s241 = sadd.s32 %s240, 1
      %p244 = scmp.eq.s32.totalorder %s21, 5
      %p245 = scmp.ne.s32.totalorder %s240, %s242
      %p246 = scmp.eq.s32.totalorder %s21, 0
      %p247 = por %p245, %p246
      %p248 = scmp.ne.s32.totalorder %s240, %s242
      %p249 = scmp.eq.s32.totalorder %s26, 5
      %p250 = por %p248, %p249
      %p251 = scmp.ne.s32.totalorder %s242, %s243
      %p252 = scmp.eq.s32.totalorder %s26, 0
      %p253 = por %p251, %p252
      %p254 = scmp.ne.s32.totalorder %s242, %s243
      %p255 = scmp.eq.s32.totalorder %s27, 5
      %p256 = por %p254, %p255
      %p258 = scmp.ne.s32.totalorder %s243, %s257
      %p259 = scmp.eq.s32.totalorder %s27, 0
      %p260 = por %p258, %p259
      %s262 = sadd.s32 %s261, 1
      %p265 = scmp.eq.s32.totalorder %s21, 5
      %p266 = scmp.ne.s32.totalorder %s261, %s263
      %p267 = scmp.eq.s32.totalorder %s21, 0
      %p268 = por %p266, %p267
      %p269 = scmp.ne.s32.totalorder %s261, %s263
      %p270 = scmp.eq.s32.totalorder %s26, 5
      %p271 = por %p269, %p270
      %p272 = scmp.ne.s32.totalorder %s263, %s264
      %p273 = scmp.eq.s32.totalorder %s26, 0
      %p274 = por %p272, %p273
      %p275 = scmp.ne.s32.totalorder %s263, %s264
      %p276 = scmp.eq.s32.totalorder %s27, 5
      %p277 = por %p275, %p276
      %p279 = scmp.ne.s32.totalorder %s264, %s278
      %p280 = scmp.eq.s32.totalorder %s27, 0
      %p281 = por %p279, %p280
      %s283 = sadd.s32 %s282, 1
      %p286 = scmp.eq.s32.totalorder %s21, 5
      %p287 = scmp.ne.s32.totalorder %s282, %s284
      %p288 = scmp.eq.s32.totalorder %s21, 0
      %p289 = por %p287, %p288
      %p290 = scmp.ne.s32.totalorder %s282, %s284
      %p291 = scmp.eq.s32.totalorder %s26, 5
      %p292 = por %p290, %p291
      %p293 = scmp.ne.s32.totalorder %s284, %s285
      %p294 = scmp.eq.s32.totalorder %s26, 0
      %p295 = por %p293, %p294
      %p296 = scmp.ne.s32.totalorder %s284, %s285
      %p297 = scmp.eq.s32.totalorder %s27, 5
      %p298 = por %p296, %p297
      %p300 = scmp.ne.s32.totalorder %s285, %s299
      %p301 = scmp.eq.s32.totalorder %s27, 0
      %p302 = por %p300, %p301
      %p303 = scmp.le.s32.totalorder 1, %s21
      %p304 = scmp.lt.s32.totalorder %s21, 7
      %p305 = pnand %p303, %p304
      %p306 = pneg %p305
      // Predicated region
      $region9: #{tpu_custom_call.1} parent=5 // pred_check
        _
      $region10: #{tpu_custom_call.1} parent=5 // pred_check_branch
        %308 = sbr.rel (%p305) target = $region12
      $region11: #{tpu_custom_call.1} parent=5 // pred_region
        %s309 = ssub.s32 %s21, 1
        // Predicated region
        $region13: #{tpu_custom_call.1} parent=11 // pred_check
          %p310 = pneg %p106
        $region14: #{tpu_custom_call.1} parent=11 // pred_check_branch
          %312 = sbr.rel (%p310) target = $region16
        $region15: #{tpu_custom_call.1} parent=11 // pred_region
          _
        $region16: #{tpu_custom_call.1} parent=11 // pred_fallthru
          _
        // Predicated region
        $region17: #{tpu_custom_call.1} parent=11 // pred_check
          %p313 = pneg %p127
        $region18: #{tpu_custom_call.1} parent=11 // pred_check_branch
          %315 = sbr.rel (%p313) target = $region20
        $region19: #{tpu_custom_call.1} parent=11 // pred_region
          _
        $region20: #{tpu_custom_call.1} parent=11 // pred_fallthru
          _
        // Predicated region
        $region21: #{tpu_custom_call.1} parent=11 // pred_check
          %p316 = pneg %p148
        $region22: #{tpu_custom_call.1} parent=11 // pred_check_branch
          %318 = sbr.rel (%p316) target = $region24
        $region23: #{tpu_custom_call.1} parent=11 // pred_region
          _
        $region24: #{tpu_custom_call.1} parent=11 // pred_fallthru
          _
        // Predicated region
        $region25: #{tpu_custom_call.1} parent=11 // pred_check
          %p319 = pneg %p169
        $region26: #{tpu_custom_call.1} parent=11 // pred_check_branch
          %321 = sbr.rel (%p319) target = $region28
        $region27: #{tpu_custom_call.1} parent=11 // pred_region
          _
        $region28: #{tpu_custom_call.1} parent=11 // pred_fallthru
          _
        // Predicated region
        $region29: #{tpu_custom_call.1} parent=11 // pred_check
          %p322 = pneg %p190
        $region30: #{tpu_custom_call.1} parent=11 // pred_check_branch
          %324 = sbr.rel (%p322) target = $region32
        $region31: #{tpu_custom_call.1} parent=11 // pred_region
          _
        $region32: #{tpu_custom_call.1} parent=11 // pred_fallthru
          _
        // Predicated region
        $region33: #{tpu_custom_call.1} parent=11 // pred_check
          %p325 = pneg %p211
        $region34: #{tpu_custom_call.1} parent=11 // pred_check_branch
          %327 = sbr.rel (%p325) target = $region36
        $region35: #{tpu_custom_call.1} parent=11 // pred_region
          _
        $region36: #{tpu_custom_call.1} parent=11 // pred_fallthru
          _
        // Predicated region
        $region37: #{tpu_custom_call.1} parent=11 // pred_check
          %p328 = pneg %p232
        $region38: #{tpu_custom_call.1} parent=11 // pred_check_branch
          %330 = sbr.rel (%p328) target = $region40
        $region39: #{tpu_custom_call.1} parent=11 // pred_region
          _
        $region40: #{tpu_custom_call.1} parent=11 // pred_fallthru
          _
        // Predicated region
        $region41: #{tpu_custom_call.1} parent=11 // pred_check
          %p331 = pneg %p253
        $region42: #{tpu_custom_call.1} parent=11 // pred_check_branch
          %333 = sbr.rel (%p331) target = $region44
        $region43: #{tpu_custom_call.1} parent=11 // pred_region
          _
        $region44: #{tpu_custom_call.1} parent=11 // pred_fallthru
          _
      $region12: #{tpu_custom_call.1} parent=5 // pred_fallthru
        _
      %p334 = scmp.lt.s32.totalorder %s21, 6
      // Predicated region
      $region45: #{tpu_custom_call.1} parent=5 // pred_check
        %p335 = pneg %p334
      $region46: #{tpu_custom_call.1} parent=5 // pred_check_branch
        %337 = sbr.rel (%p335) target = $region48
      $region47: #{tpu_custom_call.1} parent=5 // pred_region
        // Predicated region
        $region49: #{tpu_custom_call.1} parent=47 // pred_check
          %p338 = pneg %p53
        $region50: #{tpu_custom_call.1} parent=47 // pred_check_branch
          %340 = sbr.rel (%p338) target = $region52
        $region51: #{tpu_custom_call.1} parent=47 // pred_region
          %s341 = smul.u32 16, %s29
          %p342 = scmp.lt.s32.totalorder %s341, 47
          %s343 = scalar_select %p342, %s341, 47
          %s344 = smul.addr %s343, 8
          %s345 = scalar_lea.vmem %s0, %s344
          %s346 = smul.u32 16, %s29
        $region52: #{tpu_custom_call.1} parent=47 // pred_fallthru
          _
        // Predicated region
        $region53: #{tpu_custom_call.1} parent=47 // pred_check
          %p347 = pneg %p79
        $region54: #{tpu_custom_call.1} parent=47 // pred_check_branch
          %349 = sbr.rel (%p347) target = $region56
        $region55: #{tpu_custom_call.1} parent=47 // pred_region
          %s350 = smul.u32 16, %s29
          %p351 = scmp.lt.s32.totalorder %s350, 47
          %s352 = scalar_select %p351, %s350, 47
          %s353 = smul.addr %s352, 8
          %s354 = scalar_lea.vmem %s1, %s353
          %s355 = smul.u32 16, %s29
        $region56: #{tpu_custom_call.1} parent=47 // pred_fallthru
          _
      $region48: #{tpu_custom_call.1} parent=5 // pred_fallthru
        _
      %p356 = scmp.le.s32.totalorder 1, %s21
      %p357 = scmp.lt.s32.totalorder %s21, 7
      %p358 = pnand %p356, %p357
      %p359 = pneg %p358
      // Predicated region
      $region57: #{tpu_custom_call.1} parent=5 // pred_check
        _
      $region58: #{tpu_custom_call.1} parent=5 // pred_check_branch
        %361 = sbr.rel (%p358) target = $region60
      $region59: #{tpu_custom_call.1} parent=5 // pred_region
        %s362 = ssub.s32 %s21, 1
        %s363 = smul.u32 16, %s31
        %p364 = scmp.lt.s32.totalorder %s363, 47
        %s365 = scalar_select %p364, %s363, 47
        %s366 = smul.addr %s365, 8
        %s367 = scalar_lea.vmem %s0, %s366
        %p368 = pneg %p59
        %p369 = pneg %p56
        %s370 = smul.u32 16, %s31
        %p371 = scmp.lt.s32.totalorder %s370, 47
        %s372 = scalar_select %p371, %s370, 47
        %s373 = smul.addr %s372, 8
        %s374 = scalar_lea.vmem %s1, %s373
        %p375 = pneg %p85
        %p376 = pneg %p82
        %p377 = pneg %p106
        %p378 = pneg %p103
        %p379 = pneg %p127
        %p380 = pneg %p124
        %p381 = pneg %p148
        %p382 = pneg %p145
        %p383 = pneg %p169
        %p384 = pneg %p166
        %p385 = pneg %p190
        %p386 = pneg %p187
        %p387 = pneg %p211
        %p388 = pneg %p208
        %p389 = pneg %p232
        %p390 = pneg %p229
        %p391 = pneg %p253
        %p392 = pneg %p250
        %p393 = pneg %p274
        %p394 = pneg %p271
        %p395 = pneg %p295
        %p396 = pneg %p292
        %s397 = smul.u32 16, %s31
        %p398 = scmp.lt.s32.totalorder %s397, 47
        %s399 = scalar_select %p398, %s397, 47
        %s400 = smul.addr %s399, 8
        %s401 = scalar_lea.vmem %s0, %s400
        %s402 = smul.u32 16, %s31
        %s403 = smul.u32 16, %s31
        %p404 = scmp.lt.s32.totalorder %s403, 47
        %s405 = scalar_select %p404, %s403, 47
        %s406 = smul.addr %s405, 8
        %s407 = scalar_lea.vmem %s1, %s406
        %s408 = smul.u32 16, %s31
        %v409 = vld [vmem:[%s401] sm:$0xff]
        %v410 = vld [vmem:[%s401 + $0x8] sm:$0xff]
        %v411 = vld [vmem:[%s401 + $0x10] sm:$0xff]
        %v412 = vld [vmem:[%s401 + $0x18] sm:$0xff]
        %v413 = vld [vmem:[%s401 + $0x20] sm:$0xff]
        %v414 = vld [vmem:[%s401 + $0x28] sm:$0xff]
        %v415 = vld [vmem:[%s401 + $0x30] sm:$0xff]
        %v416 = vld [vmem:[%s401 + $0x38] sm:$0xff]
        %v417 = vld [vmem:[%s401 + $0x40] sm:$0xff]
        %v418 = vld [vmem:[%s401 + $0x48] sm:$0xff]
        %v419 = vld [vmem:[%s401 + $0x50] sm:$0xff]
        %v420 = vld [vmem:[%s401 + $0x58] sm:$0xff]
        %v421 = vld [vmem:[%s401 + $0x60] sm:$0xff]
        %v422 = vld [vmem:[%s401 + $0x68] sm:$0xff]
        %v423 = vld [vmem:[%s401 + $0x70] sm:$0xff]
        %v424 = vld [vmem:[%s401 + $0x78] sm:$0xff]
        %v425 = vld [vmem:[%s407] sm:$0xff]
        %v426 = vld [vmem:[%s407 + $0x8] sm:$0xff]
        %v427 = vld [vmem:[%s407 + $0x10] sm:$0xff]
        %v428 = vld [vmem:[%s407 + $0x18] sm:$0xff]
        %v429 = vld [vmem:[%s407 + $0x20] sm:$0xff]
        %v430 = vld [vmem:[%s407 + $0x28] sm:$0xff]
        %v431 = vld [vmem:[%s407 + $0x30] sm:$0xff]
        %v432 = vld [vmem:[%s407 + $0x38] sm:$0xff]
        %v433 = vld [vmem:[%s407 + $0x40] sm:$0xff]
        %v434 = vld [vmem:[%s407 + $0x48] sm:$0xff]
        %v435 = vld [vmem:[%s407 + $0x50] sm:$0xff]
        %v436 = vld [vmem:[%s407 + $0x58] sm:$0xff]
        %v437 = vld [vmem:[%s407 + $0x60] sm:$0xff]
        %v438 = vld [vmem:[%s407 + $0x68] sm:$0xff]
        %v439 = vld [vmem:[%s407 + $0x70] sm:$0xff]
        %v440 = vld [vmem:[%s407 + $0x78] sm:$0xff]
        %v441 = vlaneseq
        %v442 = vand.u32 %v441, 127
        %443 = vset.pattern.permute.xlu0 0
        %444 = vperm.xlu0 %443, %v425
        %v445 = vpop.permute.xlu0 %444
        %446 = vset.pattern.permute.xlu0 0
        %447 = vperm.xlu0 %446, %v426
        %v448 = vpop.permute.xlu0 %447
        %449 = vset.pattern.permute.xlu0 0
        %450 = vperm.xlu0 %449, %v427
        %v451 = vpop.permute.xlu0 %450
        %452 = vset.pattern.permute.xlu0 0
        %453 = vperm.xlu0 %452, %v428
        %v454 = vpop.permute.xlu0 %453
        %455 = vset.pattern.permute.xlu0 0
        %456 = vperm.xlu0 %455, %v429
        %v457 = vpop.permute.xlu0 %456
        %458 = vset.pattern.permute.xlu0 0
        %459 = vperm.xlu0 %458, %v430
        %v460 = vpop.permute.xlu0 %459
        %461 = vset.pattern.permute.xlu0 0
        %462 = vperm.xlu0 %461, %v431
        %v463 = vpop.permute.xlu0 %462
        %464 = vset.pattern.permute.xlu0 0
        %465 = vperm.xlu0 %464, %v432
        %v466 = vpop.permute.xlu0 %465
        %467 = vset.pattern.permute.xlu0 0
        %468 = vperm.xlu0 %467, %v433
        %v469 = vpop.permute.xlu0 %468
        %470 = vset.pattern.permute.xlu0 0
        %471 = vperm.xlu0 %470, %v434
        %v472 = vpop.permute.xlu0 %471
        %473 = vset.pattern.permute.xlu0 0
        %474 = vperm.xlu0 %473, %v435
        %v475 = vpop.permute.xlu0 %474
        %476 = vset.pattern.permute.xlu0 0
        %477 = vperm.xlu0 %476, %v436
        %v478 = vpop.permute.xlu0 %477
        %479 = vset.pattern.permute.xlu0 0
        %480 = vperm.xlu0 %479, %v437
        %v481 = vpop.permute.xlu0 %480
        %482 = vset.pattern.permute.xlu0 0
        %483 = vperm.xlu0 %482, %v438
        %v484 = vpop.permute.xlu0 %483
        %485 = vset.pattern.permute.xlu0 0
        %486 = vperm.xlu0 %485, %v439
        %v487 = vpop.permute.xlu0 %486
        %488 = vset.pattern.permute.xlu0 0
        %489 = vperm.xlu0 %488, %v440
        %v490 = vpop.permute.xlu0 %489
        %vm491 = vcmp.eq.s32.totalorder %v442, %v445
        %vm492 = vcmp.eq.s32.totalorder %v442, %v448
        %vm493 = vcmp.eq.s32.totalorder %v442, %v451
        %vm494 = vcmp.eq.s32.totalorder %v442, %v454
        %vm495 = vcmp.eq.s32.totalorder %v442, %v457
        %vm496 = vcmp.eq.s32.totalorder %v442, %v460
        %vm497 = vcmp.eq.s32.totalorder %v442, %v463
        %vm498 = vcmp.eq.s32.totalorder %v442, %v466
        %vm499 = vcmp.eq.s32.totalorder %v442, %v469
        %vm500 = vcmp.eq.s32.totalorder %v442, %v472
        %vm501 = vcmp.eq.s32.totalorder %v442, %v475
        %vm502 = vcmp.eq.s32.totalorder %v442, %v478
        %vm503 = vcmp.eq.s32.totalorder %v442, %v481
        %vm504 = vcmp.eq.s32.totalorder %v442, %v484
        %vm505 = vcmp.eq.s32.totalorder %v442, %v487
        %vm506 = vcmp.eq.s32.totalorder %v442, %v490
        %v507 = vsel %vm491, 1, 0
        %v508 = vsel %vm492, 1, 0
        %v509 = vsel %vm493, 1, 0
        %v510 = vsel %vm494, 1, 0
        %v511 = vsel %vm495, 1, 0
        %v512 = vsel %vm496, 1, 0
        %v513 = vsel %vm497, 1, 0
        %v514 = vsel %vm498, 1, 0
        %v515 = vsel %vm499, 1, 0
        %v516 = vsel %vm500, 1, 0
        %v517 = vsel %vm501, 1, 0
        %v518 = vsel %vm502, 1, 0
        %v519 = vsel %vm503, 1, 0
        %v520 = vsel %vm504, 1, 0
        %v521 = vsel %vm505, 1, 0
        %v522 = vsel %vm506, 1, 0
        %v523 = vcvt.s32.f32 %v507
        %v524 = vcvt.s32.f32 %v508
        %v525 = vcvt.s32.f32 %v509
        %v526 = vcvt.s32.f32 %v510
        %v527 = vcvt.s32.f32 %v511
        %v528 = vcvt.s32.f32 %v512
        %v529 = vcvt.s32.f32 %v513
        %v530 = vcvt.s32.f32 %v514
        %v531 = vcvt.s32.f32 %v515
        %v532 = vcvt.s32.f32 %v516
        %v533 = vcvt.s32.f32 %v517
        %v534 = vcvt.s32.f32 %v518
        %v535 = vcvt.s32.f32 %v519
        %v536 = vcvt.s32.f32 %v520
        %v537 = vcvt.s32.f32 %v521
        %v538 = vcvt.s32.f32 %v522
        %v539 = vld [vmem:[%s2] sm:$0xff]
        %v540 = vld [vmem:[%s2 + $0x8] sm:$0xff]
        %v541 = vld [vmem:[%s2 + $0x10] sm:$0xff]
        %v542 = vld [vmem:[%s2 + $0x18] sm:$0xff]
        %v543 = vld [vmem:[%s3] sm:$0x1]
        %v545 = vlaneseq
        %v546 = vshrl.u32 %v545, 7
        %v547 = vsub.s32 0, %v546
        %v548 = vrot.slane %v543, %v547
        %vm550 = vcmask 261120
        %v552 = vsel %vm550, %v409, 0
        %v555 = vsel %vm550, %v410, 0
        %v558 = vsel %vm550, %v411, 0
        %v561 = vsel %vm550, %v412, 0
        %v564 = vsel %vm550, %v413, 0
        %v567 = vsel %vm550, %v414, 0
        %v570 = vsel %vm550, %v415, 0
        %v573 = vsel %vm550, %v416, 0
        %v576 = vsel %vm550, %v417, 0
        %v579 = vsel %vm550, %v418, 0
        %v582 = vsel %vm550, %v419, 0
        %v585 = vsel %vm550, %v420, 0
        %v588 = vsel %vm550, %v421, 0
        %v591 = vsel %vm550, %v422, 0
        %v594 = vsel %vm550, %v423, 0
        %v597 = vsel %vm550, %v424, 0
        %599 = vmatprep.subr.mxu0 0.0
        %600 = vmatpush1.msra.mxu0 %v539
        %601 = vmatprep.subr.mxu0 0.0
        %602 = vmatpush1.msra.mxu0 %v540
        %603 = vmatprep.subr.mxu0 0.0
        %604 = vmatpush1.msra.mxu0 %v541
        %605 = vmatprep.subr.mxu0 0.0
        %606 = vmatpush1.msra.mxu0 %v542
        %607 = vmatprep.subr.mxu0 0.0
        %608 = vmatpush1.msra.mxu0 0.0
        %609 = vmatprep.subr.mxu0 0.0
        %610 = vmatpush1.msra.mxu0 0.0
        %611 = vmatprep.subr.mxu0 0.0
        %612 = vmatpush1.msra.mxu0 0.0
        %613 = vmatprep.subr.mxu0 0.0
        %614 = vmatpush1.msra.mxu0 0.0
        %615 = vmatprep.subr.mxu0 0.0
        %616 = vmatpush1.msra.mxu0 0.0
        %617 = vmatprep.subr.mxu0 0.0
        %618 = vmatpush1.msra.mxu0 0.0
        %619 = vmatprep.subr.mxu0 0.0
        %620 = vmatpush1.msra.mxu0 0.0
        %621 = vmatprep.subr.mxu0 0.0
        %622 = vmatpush1.msra.mxu0 0.0
        %623 = vmatprep.subr.mxu0 0.0
        %624 = vmatpush1.msra.mxu0 0.0
        %625 = vmatprep.subr.mxu0 0.0
        %626 = vmatpush1.msra.mxu0 0.0
        %627 = vmatprep.subr.mxu0 0.0
        %628 = vmatpush1.msra.mxu0 0.0
        %629 = vmatprep.subr.mxu0 0.0
        %630 = vmatpush1.msra.mxu0 0.0
        %631 = vmatprep.subr.mxu0 0.0
        %632 = vmatpush1.msra.mxu0 0.0
        %633 = vmatprep.subr.mxu0 0.0
        %634 = vmatpush1.msra.mxu0 0.0
        %635 = vmatprep.subr.mxu0 0.0
        %636 = vmatpush1.msra.mxu0 0.0
        %637 = vmatprep.subr.mxu0 0.0
        %638 = vmatpush1.msra.mxu0 0.0
        %639 = vmatprep.subr.mxu0 0.0
        %640 = vmatpush1.msra.mxu0 0.0
        %641 = vmatprep.subr.mxu0 0.0
        %642 = vmatpush1.msra.mxu0 0.0
        %643 = vmatprep.subr.mxu0 0.0
        %644 = vmatpush1.msra.mxu0 0.0
        %645 = vmatprep.subr.mxu0 0.0
        %646 = vmatpush1.msra.mxu0 0.0
        %647 = vmatprep.subr.mxu0 0.0
        %648 = vmatpush1.msra.mxu0 0.0
        %649 = vmatprep.subr.mxu0 0.0
        %650 = vmatpush1.msra.mxu0 0.0
        %651 = vmatprep.subr.mxu0 0.0
        %652 = vmatpush1.msra.mxu0 0.0
        %653 = vmatprep.subr.mxu0 0.0
        %654 = vmatpush1.msra.mxu0 0.0
        %655 = vmatprep.subr.mxu0 0.0
        %656 = vmatpush1.msra.mxu0 0.0
        %657 = vmatprep.subr.mxu0 0.0
        %658 = vmatpush1.msra.mxu0 0.0
        %659 = vmatprep.subr.mxu0 0.0
        %660 = vmatpush1.msra.mxu0 0.0
        %661 = vmatprep.subr.mxu0 0.0
        %662 = vmatpush1.msra.mxu0 0.0
        %663 = vmatprep.mubr.f32.mxu0 0.0
        %664 = vmatmul.mubr.f32.gmra.mrb[0].mxu0 %v552
        %v665 = vpop.f32.mrb[0].mxu0
        %v666 = vadd.f32 %v548, %v665
        %v667 = vpop.f32.mrb[0].mxu0
        %668 = vmatprep.mubr.f32.mxu0 0.0
        %669 = vmatmul.mubr.f32.gmra.mrb[0].mxu0 %v555
        %v670 = vpop.f32.mrb[0].mxu0
        %v671 = vadd.f32 %v548, %v670
        %v672 = vpop.f32.mrb[0].mxu0
        %673 = vmatprep.mubr.f32.mxu0 0.0
        %674 = vmatmul.mubr.f32.gmra.mrb[0].mxu0 %v558
        %v675 = vpop.f32.mrb[0].mxu0
        %v676 = vadd.f32 %v548, %v675
        %v677 = vpop.f32.mrb[0].mxu0
        %678 = vmatprep.mubr.f32.mxu0 0.0
        %679 = vmatmul.mubr.f32.gmra.mrb[0].mxu0 %v561
        %v680 = vpop.f32.mrb[0].mxu0
        %v681 = vadd.f32 %v548, %v680
        %v682 = vpop.f32.mrb[0].mxu0
        %683 = vmatprep.mubr.f32.mxu0 0.0
        %684 = vmatmul.mubr.f32.gmra.mrb[0].mxu0 %v564
        %v685 = vpop.f32.mrb[0].mxu0
        %v686 = vadd.f32 %v548, %v685
        %v687 = vpop.f32.mrb[0].mxu0
        %688 = vmatprep.mubr.f32.mxu0 0.0
        %689 = vmatmul.mubr.f32.gmra.mrb[0].mxu0 %v567
        %v690 = vpop.f32.mrb[0].mxu0
        %v691 = vadd.f32 %v548, %v690
        %v692 = vpop.f32.mrb[0].mxu0
        %693 = vmatprep.mubr.f32.mxu0 0.0
        %694 = vmatmul.mubr.f32.gmra.mrb[0].mxu0 %v570
        %v695 = vpop.f32.mrb[0].mxu0
        %v696 = vadd.f32 %v548, %v695
        %v697 = vpop.f32.mrb[0].mxu0
        %698 = vmatprep.mubr.f32.mxu0 0.0
        %699 = vmatmul.mubr.f32.gmra.mrb[0].mxu0 %v573
        %v700 = vpop.f32.mrb[0].mxu0
        %v701 = vadd.f32 %v548, %v700
        %v702 = vpop.f32.mrb[0].mxu0
        %703 = vmatprep.mubr.f32.mxu0 0.0
        %704 = vmatmul.mubr.f32.gmra.mrb[0].mxu0 %v576
        %v705 = vpop.f32.mrb[0].mxu0
        %v706 = vadd.f32 %v548, %v705
        %v707 = vpop.f32.mrb[0].mxu0
        %708 = vmatprep.mubr.f32.mxu0 0.0
        %709 = vmatmul.mubr.f32.gmra.mrb[0].mxu0 %v579
        %v710 = vpop.f32.mrb[0].mxu0
        %v711 = vadd.f32 %v548, %v710
        %v712 = vpop.f32.mrb[0].mxu0
        %713 = vmatprep.mubr.f32.mxu0 0.0
        %714 = vmatmul.mubr.f32.gmra.mrb[0].mxu0 %v582
        %v715 = vpop.f32.mrb[0].mxu0
        %v716 = vadd.f32 %v548, %v715
        %v717 = vpop.f32.mrb[0].mxu0
        %718 = vmatprep.mubr.f32.mxu0 0.0
        %719 = vmatmul.mubr.f32.gmra.mrb[0].mxu0 %v585
        %v720 = vpop.f32.mrb[0].mxu0
        %v721 = vadd.f32 %v548, %v720
        %v722 = vpop.f32.mrb[0].mxu0
        %723 = vmatprep.mubr.f32.mxu0 0.0
        %724 = vmatmul.mubr.f32.gmra.mrb[0].mxu0 %v588
        %v725 = vpop.f32.mrb[0].mxu0
        %v726 = vadd.f32 %v548, %v725
        %v727 = vpop.f32.mrb[0].mxu0
        %728 = vmatprep.mubr.f32.mxu0 0.0
        %729 = vmatmul.mubr.f32.gmra.mrb[0].mxu0 %v591
        %v730 = vpop.f32.mrb[0].mxu0
        %v731 = vadd.f32 %v548, %v730
        %v732 = vpop.f32.mrb[0].mxu0
        %733 = vmatprep.mubr.f32.mxu0 0.0
        %734 = vmatmul.mubr.f32.gmra.mrb[0].mxu0 %v594
        %v735 = vpop.f32.mrb[0].mxu0
        %v736 = vadd.f32 %v548, %v735
        %v737 = vpop.f32.mrb[0].mxu0
        %738 = vmatprep.mubr.f32.mxu0 0.0
        %739 = vmatmul.mubr.f32.gmra.mrb[0].mxu0 %v597
        %v740 = vpop.f32.mrb[0].mxu0
        %v741 = vadd.f32 %v548, %v740
        %v742 = vpop.f32.mrb[0].mxu0
        %743 = vdwg.mxu0
        %v744 = vmax.f32 %v666, 0.0
        %v745 = vmax.f32 %v671, 0.0
        %v746 = vmax.f32 %v676, 0.0
        %v747 = vmax.f32 %v681, 0.0
        %v748 = vmax.f32 %v686, 0.0
        %v749 = vmax.f32 %v691, 0.0
        %v750 = vmax.f32 %v696, 0.0
        %v751 = vmax.f32 %v701, 0.0
        %v752 = vmax.f32 %v706, 0.0
        %v753 = vmax.f32 %v711, 0.0
        %v754 = vmax.f32 %v716, 0.0
        %v755 = vmax.f32 %v721, 0.0
        %v756 = vmax.f32 %v726, 0.0
        %v757 = vmax.f32 %v731, 0.0
        %v758 = vmax.f32 %v736, 0.0
        %v759 = vmax.f32 %v741, 0.0
        %v760 = vld [vmem:[%s4] sm:$0x1]
        %v762 = vlaneseq
        %v763 = vshrl.u32 %v762, 7
        %v764 = vsub.s32 0, %v763
        %v765 = vrot.slane %v760, %v764
        %v767 = vmul.f32 %v744, %v765
        %v768 = vmul.f32 %v745, %v765
        %v769 = vmul.f32 %v746, %v765
        %v770 = vmul.f32 %v747, %v765
        %v771 = vmul.f32 %v748, %v765
        %v772 = vmul.f32 %v749, %v765
        %v773 = vmul.f32 %v750, %v765
        %v774 = vmul.f32 %v751, %v765
        %v775 = vmul.f32 %v752, %v765
        %v776 = vmul.f32 %v753, %v765
        %v777 = vmul.f32 %v754, %v765
        %v778 = vmul.f32 %v755, %v765
        %v779 = vmul.f32 %v756, %v765
        %v780 = vmul.f32 %v757, %v765
        %v781 = vmul.f32 %v758, %v765
        %v782 = vmul.f32 %v759, %v765
        %v783 = vsel %vm550, %v767, 0.0
        %784 = vadd.xlane.f32.xlu0 %v783
        %v785 = vpop.xlane.xlu0 %784
        %v786 = vsel %vm550, %v768, 0.0
        %787 = vadd.xlane.f32.xlu0 %v786
        %v788 = vpop.xlane.xlu0 %787
        %v789 = vsel %vm550, %v769, 0.0
        %790 = vadd.xlane.f32.xlu0 %v789
        %v791 = vpop.xlane.xlu0 %790
        %v792 = vsel %vm550, %v770, 0.0
        %793 = vadd.xlane.f32.xlu0 %v792
        %v794 = vpop.xlane.xlu0 %793
        %v795 = vsel %vm550, %v771, 0.0
        %796 = vadd.xlane.f32.xlu0 %v795
        %v797 = vpop.xlane.xlu0 %796
        %v798 = vsel %vm550, %v772, 0.0
        %799 = vadd.xlane.f32.xlu0 %v798
        %v800 = vpop.xlane.xlu0 %799
        %v801 = vsel %vm550, %v773, 0.0
        %802 = vadd.xlane.f32.xlu0 %v801
        %v803 = vpop.xlane.xlu0 %802
        %v804 = vsel %vm550, %v774, 0.0
        %805 = vadd.xlane.f32.xlu0 %v804
        %v806 = vpop.xlane.xlu0 %805
        %v807 = vsel %vm550, %v775, 0.0
        %808 = vadd.xlane.f32.xlu0 %v807
        %v809 = vpop.xlane.xlu0 %808
        %v810 = vsel %vm550, %v776, 0.0
        %811 = vadd.xlane.f32.xlu0 %v810
        %v812 = vpop.xlane.xlu0 %811
        %v813 = vsel %vm550, %v777, 0.0
        %814 = vadd.xlane.f32.xlu0 %v813
        %v815 = vpop.xlane.xlu0 %814
        %v816 = vsel %vm550, %v778, 0.0
        %817 = vadd.xlane.f32.xlu0 %v816
        %v818 = vpop.xlane.xlu0 %817
        %v819 = vsel %vm550, %v779, 0.0
        %820 = vadd.xlane.f32.xlu0 %v819
        %v821 = vpop.xlane.xlu0 %820
        %v822 = vsel %vm550, %v780, 0.0
        %823 = vadd.xlane.f32.xlu0 %v822
        %v824 = vpop.xlane.xlu0 %823
        %v825 = vsel %vm550, %v781, 0.0
        %826 = vadd.xlane.f32.xlu0 %v825
        %v827 = vpop.xlane.xlu0 %826
        %v828 = vsel %vm550, %v782, 0.0
        %829 = vadd.xlane.f32.xlu0 %v828
        %v830 = vpop.xlane.xlu0 %829
        %v831 = vld [vmem:[#allocation4] sm:$0x1]
        %v833 = vlaneseq
        %v834 = vshrl.u32 %v833, 7
        %v835 = vsub.s32 0, %v834
        %v836 = vrot.slane %v831, %v835
        %v838 = vadd.f32 %v785, %v836
        %v839 = vadd.f32 %v788, %v836
        %v840 = vadd.f32 %v791, %v836
        %v841 = vadd.f32 %v794, %v836
        %v842 = vadd.f32 %v797, %v836
        %v843 = vadd.f32 %v800, %v836
        %v844 = vadd.f32 %v803, %v836
        %v845 = vadd.f32 %v806, %v836
        %v846 = vadd.f32 %v809, %v836
        %v847 = vadd.f32 %v812, %v836
        %v848 = vadd.f32 %v815, %v836
        %v849 = vadd.f32 %v818, %v836
        %v850 = vadd.f32 %v821, %v836
        %v851 = vadd.f32 %v824, %v836
        %v852 = vadd.f32 %v827, %v836
        %v853 = vadd.f32 %v830, %v836
        %p854 = scmp.eq.s32.totalorder %s30, 0
        %p855 = scmp.eq.s32.totalorder %s31, 0
        %p856 = pnand %p854, %p855
        %p857 = pneg %p856
        // Predicated region
        $region61: #{tpu_custom_call.1} parent=59 // pred_check
          _
        $region62: #{tpu_custom_call.1} parent=59 // pred_check_branch
          %859 = sbr.rel (%p856) target = $region64
        $region63: #{tpu_custom_call.1} parent=59 // pred_region
          %vm860 = vcmask 57344
          %861 = vst.msk [vmem:[#allocation2] sm:$0x1] %vm860, -1e+30
          %862 = vst.msk [vmem:[#allocation3] sm:$0x1] %vm860, 0.0
          %863 = vst [vmem:[#allocation5] sm:$0xff] 0.0
        $region64: #{tpu_custom_call.1} parent=59 // pred_fallthru
          _
        // Predicated region
        $region65: #{tpu_custom_call.1} parent=59 // pred_check
          %p864 = pneg %p854
        $region66: #{tpu_custom_call.1} parent=59 // pred_check_branch
          %866 = sbr.rel (%p864) target = $region68
        $region67: #{tpu_custom_call.1} parent=59 // pred_region
          %868 = vset.pattern.permute.xlu0 0
          %869 = vperm.xlu0 %868, %v838
          %v870 = vpop.permute.xlu0 %869
          %873 = vset.pattern.permute.xlu0 0
          %874 = vperm.xlu0 %873, %v839
          %v875 = vpop.permute.xlu0 %874
          %878 = vset.pattern.permute.xlu0 0
          %879 = vperm.xlu0 %878, %v840
          %v880 = vpop.permute.xlu0 %879
          %883 = vset.pattern.permute.xlu0 0
          %884 = vperm.xlu0 %883, %v841
          %v885 = vpop.permute.xlu0 %884
          %888 = vset.pattern.permute.xlu0 0
          %889 = vperm.xlu0 %888, %v842
          %v890 = vpop.permute.xlu0 %889
          %893 = vset.pattern.permute.xlu0 0
          %894 = vperm.xlu0 %893, %v843
          %v895 = vpop.permute.xlu0 %894
          %898 = vset.pattern.permute.xlu0 0
          %899 = vperm.xlu0 %898, %v844
          %v900 = vpop.permute.xlu0 %899
          %903 = vset.pattern.permute.xlu0 0
          %904 = vperm.xlu0 %903, %v845
          %v905 = vpop.permute.xlu0 %904
          %908 = vset.pattern.permute.xlu0 0
          %909 = vperm.xlu0 %908, %v846
          %v910 = vpop.permute.xlu0 %909
          %913 = vset.pattern.permute.xlu0 0
          %914 = vperm.xlu0 %913, %v847
          %v915 = vpop.permute.xlu0 %914
          %918 = vset.pattern.permute.xlu0 0
          %919 = vperm.xlu0 %918, %v848
          %v920 = vpop.permute.xlu0 %919
          %923 = vset.pattern.permute.xlu0 0
          %924 = vperm.xlu0 %923, %v849
          %v925 = vpop.permute.xlu0 %924
          %928 = vset.pattern.permute.xlu0 0
          %929 = vperm.xlu0 %928, %v850
          %v930 = vpop.permute.xlu0 %929
          %933 = vset.pattern.permute.xlu0 0
          %934 = vperm.xlu0 %933, %v851
          %v935 = vpop.permute.xlu0 %934
          %938 = vset.pattern.permute.xlu0 0
          %939 = vperm.xlu0 %938, %v852
          %v940 = vpop.permute.xlu0 %939
          %943 = vset.pattern.permute.xlu0 0
          %944 = vperm.xlu0 %943, %v853
          %v945 = vpop.permute.xlu0 %944
          %v947 = vsel %vm491, %v870, -1e+30
          %v948 = vsel %vm492, %v875, -1e+30
          %v949 = vsel %vm493, %v880, -1e+30
          %v950 = vsel %vm494, %v885, -1e+30
          %v951 = vsel %vm495, %v890, -1e+30
          %v952 = vsel %vm496, %v895, -1e+30
          %v953 = vsel %vm497, %v900, -1e+30
          %v954 = vsel %vm498, %v905, -1e+30
          %v955 = vsel %vm499, %v910, -1e+30
          %v956 = vsel %vm500, %v915, -1e+30
          %v957 = vsel %vm501, %v920, -1e+30
          %v958 = vsel %vm502, %v925, -1e+30
          %v959 = vsel %vm503, %v930, -1e+30
          %v960 = vsel %vm504, %v935, -1e+30
          %v961 = vsel %vm505, %v940, -1e+30
          %v962 = vsel %vm506, %v945, -1e+30
          %vm963 = vcmask 64512
          %v964 = vsel %vm963, %v947, -inf
          %v965 = vsel %vm963, %v948, -inf
          %v966 = vsel %vm963, %v949, -inf
          %v967 = vsel %vm963, %v950, -inf
          %v968 = vsel %vm963, %v951, -inf
          %v969 = vmax.f32 %v964, %v968
          %v970 = vsel %vm963, %v952, -inf
          %v971 = vmax.f32 %v965, %v970
          %v972 = vsel %vm963, %v953, -inf
          %v973 = vmax.f32 %v966, %v972
          %v974 = vsel %vm963, %v954, -inf
          %v975 = vmax.f32 %v967, %v974
          %v976 = vsel %vm963, %v955, -inf
          %v977 = vmax.f32 %v969, %v976
          %v978 = vsel %vm963, %v956, -inf
          %v979 = vmax.f32 %v971, %v978
          %v980 = vsel %vm963, %v957, -inf
          %v981 = vmax.f32 %v973, %v980
          %v982 = vsel %vm963, %v958, -inf
          %v983 = vmax.f32 %v975, %v982
          %v984 = vsel %vm963, %v959, -inf
          %v985 = vmax.f32 %v977, %v984
          %v986 = vsel %vm963, %v960, -inf
          %v987 = vmax.f32 %v979, %v986
          %v988 = vsel %vm963, %v961, -inf
          %v989 = vmax.f32 %v981, %v988
          %v990 = vsel %vm963, %v962, -inf
          %v991 = vmax.f32 %v983, %v990
          %v992 = vmax.f32 %v985, %v987
          %v993 = vmax.f32 %v989, %v991
          %v994 = vmax.f32 %v992, %v993
          %v995 = vrot.slane %v994, 4
          %v996 = vmax.f32 %v994, %v995
          %v997 = vrot.slane %v996, 2
          %v998 = vmax.f32 %v996, %v997
          %v999 = vrot.slane %v998, 1
          %v1000 = vmax.f32 %v998, %v999
          %v1001 = vld [vmem:[#allocation2] sm:$0x1]
          %v1002 = vmax.f32 %v1001, %v1000
          %v1004 = vlaneseq
          %v1005 = vshrl.u32 %v1004, 7
          %v1006 = vsub.s32 0, %v1005
          %v1007 = vrot.slane %v1002, %v1006
          %v1009 = vmul.f32 %v523, %v1007
          %v1010 = vmul.f32 %v524, %v1007
          %v1011 = vmul.f32 %v525, %v1007
          %v1012 = vmul.f32 %v526, %v1007
          %v1013 = vmul.f32 %v527, %v1007
          %v1014 = vmul.f32 %v528, %v1007
          %v1015 = vmul.f32 %v529, %v1007
          %v1016 = vmul.f32 %v530, %v1007
          %v1017 = vmul.f32 %v531, %v1007
          %v1018 = vmul.f32 %v532, %v1007
          %v1019 = vmul.f32 %v533, %v1007
          %v1020 = vmul.f32 %v534, %v1007
          %v1021 = vmul.f32 %v535, %v1007
          %v1022 = vmul.f32 %v536, %v1007
          %v1023 = vmul.f32 %v537, %v1007
          %v1024 = vmul.f32 %v538, %v1007
          %v1025 = vsel %vm963, %v1009, 0.0
          %1026 = vadd.xlane.f32.xlu0 %v1025
          %v1027 = vpop.xlane.xlu0 %1026
          %v1028 = vsel %vm963, %v1010, 0.0
          %1029 = vadd.xlane.f32.xlu0 %v1028
          %v1030 = vpop.xlane.xlu0 %1029
          %v1031 = vsel %vm963, %v1011, 0.0
          %1032 = vadd.xlane.f32.xlu0 %v1031
          %v1033 = vpop.xlane.xlu0 %1032
          %v1034 = vsel %vm963, %v1012, 0.0
          %1035 = vadd.xlane.f32.xlu0 %v1034
          %v1036 = vpop.xlane.xlu0 %1035
          %v1037 = vsel %vm963, %v1013, 0.0
          %1038 = vadd.xlane.f32.xlu0 %v1037
          %v1039 = vpop.xlane.xlu0 %1038
          %v1040 = vsel %vm963, %v1014, 0.0
          %1041 = vadd.xlane.f32.xlu0 %v1040
          %v1042 = vpop.xlane.xlu0 %1041
          %v1043 = vsel %vm963, %v1015, 0.0
          %1044 = vadd.xlane.f32.xlu0 %v1043
          %v1045 = vpop.xlane.xlu0 %1044
          %v1046 = vsel %vm963, %v1016, 0.0
          %1047 = vadd.xlane.f32.xlu0 %v1046
          %v1048 = vpop.xlane.xlu0 %1047
          %v1049 = vsel %vm963, %v1017, 0.0
          %1050 = vadd.xlane.f32.xlu0 %v1049
          %v1051 = vpop.xlane.xlu0 %1050
          %v1052 = vsel %vm963, %v1018, 0.0
          %1053 = vadd.xlane.f32.xlu0 %v1052
          %v1054 = vpop.xlane.xlu0 %1053
          %v1055 = vsel %vm963, %v1019, 0.0
          %1056 = vadd.xlane.f32.xlu0 %v1055
          %v1057 = vpop.xlane.xlu0 %1056
          %v1058 = vsel %vm963, %v1020, 0.0
          %1059 = vadd.xlane.f32.xlu0 %v1058
          %v1060 = vpop.xlane.xlu0 %1059
          %v1061 = vsel %vm963, %v1021, 0.0
          %1062 = vadd.xlane.f32.xlu0 %v1061
          %v1063 = vpop.xlane.xlu0 %1062
          %v1064 = vsel %vm963, %v1022, 0.0
          %1065 = vadd.xlane.f32.xlu0 %v1064
          %v1066 = vpop.xlane.xlu0 %1065
          %v1067 = vsel %vm963, %v1023, 0.0
          %1068 = vadd.xlane.f32.xlu0 %v1067
          %v1069 = vpop.xlane.xlu0 %1068
          %v1070 = vsel %vm963, %v1024, 0.0
          %1071 = vadd.xlane.f32.xlu0 %v1070
          %v1072 = vpop.xlane.xlu0 %1071
          %v1073 = vsub.f32 %v838, %v1027
          %v1074 = vsub.f32 %v839, %v1030
          %v1075 = vsub.f32 %v840, %v1033
          %v1076 = vsub.f32 %v841, %v1036
          %v1077 = vsub.f32 %v842, %v1039
          %v1078 = vsub.f32 %v843, %v1042
          %v1079 = vsub.f32 %v844, %v1045
          %v1080 = vsub.f32 %v845, %v1048
          %v1081 = vsub.f32 %v846, %v1051
          %v1082 = vsub.f32 %v847, %v1054
          %v1083 = vsub.f32 %v848, %v1057
          %v1084 = vsub.f32 %v849, %v1060
          %v1085 = vsub.f32 %v850, %v1063
          %v1086 = vsub.f32 %v851, %v1066
          %v1087 = vsub.f32 %v852, %v1069
          %v1088 = vsub.f32 %v853, %v1072
          %v1089 = vmul.f32 %v1073, 1.442695
          %v1090 = vpow.pop %v1089
          %v1091 = vmul.f32 %v1074, 1.442695
          %v1092 = vpow.pop %v1091
          %v1093 = vmul.f32 %v1075, 1.442695
          %v1094 = vpow.pop %v1093
          %v1095 = vmul.f32 %v1076, 1.442695
          %v1096 = vpow.pop %v1095
          %v1097 = vmul.f32 %v1077, 1.442695
          %v1098 = vpow.pop %v1097
          %v1099 = vmul.f32 %v1078, 1.442695
          %v1100 = vpow.pop %v1099
          %v1101 = vmul.f32 %v1079, 1.442695
          %v1102 = vpow.pop %v1101
          %v1103 = vmul.f32 %v1080, 1.442695
          %v1104 = vpow.pop %v1103
          %v1105 = vmul.f32 %v1081, 1.442695
          %v1106 = vpow.pop %v1105
          %v1107 = vmul.f32 %v1082, 1.442695
          %v1108 = vpow.pop %v1107
          %v1109 = vmul.f32 %v1083, 1.442695
          %v1110 = vpow.pop %v1109
          %v1111 = vmul.f32 %v1084, 1.442695
          %v1112 = vpow.pop %v1111
          %v1113 = vmul.f32 %v1085, 1.442695
          %v1114 = vpow.pop %v1113
          %v1115 = vmul.f32 %v1086, 1.442695
          %v1116 = vpow.pop %v1115
          %v1117 = vmul.f32 %v1087, 1.442695
          %v1118 = vpow.pop %v1117
          %v1119 = vmul.f32 %v1088, 1.442695
          %v1120 = vpow.pop %v1119
          %1122 = vset.pattern.permute.xlu0 0
          %1123 = vperm.xlu0 %1122, %v1090
          %v1124 = vpop.permute.xlu0 %1123
          %1127 = vset.pattern.permute.xlu0 0
          %1128 = vperm.xlu0 %1127, %v1092
          %v1129 = vpop.permute.xlu0 %1128
          %1132 = vset.pattern.permute.xlu0 0
          %1133 = vperm.xlu0 %1132, %v1094
          %v1134 = vpop.permute.xlu0 %1133
          %1137 = vset.pattern.permute.xlu0 0
          %1138 = vperm.xlu0 %1137, %v1096
          %v1139 = vpop.permute.xlu0 %1138
          %1142 = vset.pattern.permute.xlu0 0
          %1143 = vperm.xlu0 %1142, %v1098
          %v1144 = vpop.permute.xlu0 %1143
          %1147 = vset.pattern.permute.xlu0 0
          %1148 = vperm.xlu0 %1147, %v1100
          %v1149 = vpop.permute.xlu0 %1148
          %1152 = vset.pattern.permute.xlu0 0
          %1153 = vperm.xlu0 %1152, %v1102
          %v1154 = vpop.permute.xlu0 %1153
          %1157 = vset.pattern.permute.xlu0 0
          %1158 = vperm.xlu0 %1157, %v1104
          %v1159 = vpop.permute.xlu0 %1158
          %1162 = vset.pattern.permute.xlu0 0
          %1163 = vperm.xlu0 %1162, %v1106
          %v1164 = vpop.permute.xlu0 %1163
          %1167 = vset.pattern.permute.xlu0 0
          %1168 = vperm.xlu0 %1167, %v1108
          %v1169 = vpop.permute.xlu0 %1168
          %1172 = vset.pattern.permute.xlu0 0
          %1173 = vperm.xlu0 %1172, %v1110
          %v1174 = vpop.permute.xlu0 %1173
          %1177 = vset.pattern.permute.xlu0 0
          %1178 = vperm.xlu0 %1177, %v1112
          %v1179 = vpop.permute.xlu0 %1178
          %1182 = vset.pattern.permute.xlu0 0
          %1183 = vperm.xlu0 %1182, %v1114
          %v1184 = vpop.permute.xlu0 %1183
          %1187 = vset.pattern.permute.xlu0 0
          %1188 = vperm.xlu0 %1187, %v1116
          %v1189 = vpop.permute.xlu0 %1188
          %1192 = vset.pattern.permute.xlu0 0
          %1193 = vperm.xlu0 %1192, %v1118
          %v1194 = vpop.permute.xlu0 %1193
          %1197 = vset.pattern.permute.xlu0 0
          %1198 = vperm.xlu0 %1197, %v1120
          %v1199 = vpop.permute.xlu0 %1198
          %v1201 = vmul.f32 %v523, %v1124
          %v1202 = vmul.f32 %v524, %v1129
          %v1203 = vmul.f32 %v525, %v1134
          %v1204 = vmul.f32 %v526, %v1139
          %v1205 = vmul.f32 %v527, %v1144
          %v1206 = vmul.f32 %v528, %v1149
          %v1207 = vmul.f32 %v529, %v1154
          %v1208 = vmul.f32 %v530, %v1159
          %v1209 = vmul.f32 %v531, %v1164
          %v1210 = vmul.f32 %v532, %v1169
          %v1211 = vmul.f32 %v533, %v1174
          %v1212 = vmul.f32 %v534, %v1179
          %v1213 = vmul.f32 %v535, %v1184
          %v1214 = vmul.f32 %v536, %v1189
          %v1215 = vmul.f32 %v537, %v1194
          %v1216 = vmul.f32 %v538, %v1199
          %v1217 = vsel %vm963, %v1201, 0.0
          %v1218 = vsel %vm963, %v1202, 0.0
          %v1219 = vadd.f32 %v1217, %v1218
          %v1220 = vsel %vm963, %v1203, 0.0
          %v1221 = vadd.f32 %v1219, %v1220
          %v1222 = vsel %vm963, %v1204, 0.0
          %v1223 = vadd.f32 %v1221, %v1222
          %v1224 = vsel %vm963, %v1205, 0.0
          %v1225 = vadd.f32 %v1223, %v1224
          %v1226 = vsel %vm963, %v1206, 0.0
          %v1227 = vadd.f32 %v1225, %v1226
          %v1228 = vsel %vm963, %v1207, 0.0
          %v1229 = vadd.f32 %v1227, %v1228
          %v1230 = vsel %vm963, %v1208, 0.0
          %v1231 = vadd.f32 %v1229, %v1230
          %v1232 = vsel %vm963, %v1209, 0.0
          %v1233 = vadd.f32 %v1231, %v1232
          %v1234 = vsel %vm963, %v1210, 0.0
          %v1235 = vadd.f32 %v1233, %v1234
          %v1236 = vsel %vm963, %v1211, 0.0
          %v1237 = vadd.f32 %v1235, %v1236
          %v1238 = vsel %vm963, %v1212, 0.0
          %v1239 = vadd.f32 %v1237, %v1238
          %v1240 = vsel %vm963, %v1213, 0.0
          %v1241 = vadd.f32 %v1239, %v1240
          %v1242 = vsel %vm963, %v1214, 0.0
          %v1243 = vadd.f32 %v1241, %v1242
          %v1244 = vsel %vm963, %v1215, 0.0
          %v1245 = vadd.f32 %v1243, %v1244
          %v1246 = vsel %vm963, %v1216, 0.0
          %v1247 = vadd.f32 %v1245, %v1246
          %v1248 = vrot.slane %v1247, 4
          %v1249 = vadd.f32 %v1247, %v1248
          %v1250 = vrot.slane %v1249, 2
          %v1251 = vadd.f32 %v1249, %v1250
          %v1252 = vrot.slane %v1251, 1
          %v1253 = vadd.f32 %v1251, %v1252
          %v1254 = vld [vmem:[#allocation3] sm:$0x1]
          %v1255 = vsub.f32 %v1001, %v1002
          %v1256 = vmul.f32 %v1255, 1.442695
          %v1257 = vpow.pop %v1256
          %v1258 = vmul.f32 %v1254, %v1257
          %v1259 = vadd.f32 %v1258, %v1253
          %vm1260 = vcmask 57344
          %1261 = vst.msk [vmem:[#allocation3] sm:$0x1] %vm1260, %v1259
          %1262 = vst.msk [vmem:[#allocation2] sm:$0x1] %vm1260, %v1002
        $region68: #{tpu_custom_call.1} parent=59 // pred_fallthru
          _
        %p1263 = scmp.eq.s32.totalorder %s30, 1
        // Predicated region
        $region69: #{tpu_custom_call.1} parent=59 // pred_check
          %p1264 = pneg %p1263
        $region70: #{tpu_custom_call.1} parent=59 // pred_check_branch
          %1266 = sbr.rel (%p1264) target = $region72
        $region71: #{tpu_custom_call.1} parent=59 // pred_region
          %v1267 = vld [vmem:[#allocation2] sm:$0x1]
          %v1268 = vld [vmem:[#allocation3] sm:$0x1]
          %vm1269 = vcmp.gt.f32.partialorder %v1268, 0.0
          %v1270 = vrcp.pop %v1268
          %v1271 = vmul.f32 1.0, %v1270
          %v1272 = vsel %vm1269, %v1271, 0.0
          %v1274 = vlaneseq
          %v1275 = vshrl.u32 %v1274, 7
          %v1276 = vsub.s32 0, %v1275
          %v1277 = vrot.slane %v1267, %v1276
          %v1279 = vmul.f32 %v523, %v1277
          %v1280 = vmul.f32 %v524, %v1277
          %v1281 = vmul.f32 %v525, %v1277
          %v1282 = vmul.f32 %v526, %v1277
          %v1283 = vmul.f32 %v527, %v1277
          %v1284 = vmul.f32 %v528, %v1277
          %v1285 = vmul.f32 %v529, %v1277
          %v1286 = vmul.f32 %v530, %v1277
          %v1287 = vmul.f32 %v531, %v1277
          %v1288 = vmul.f32 %v532, %v1277
          %v1289 = vmul.f32 %v533, %v1277
          %v1290 = vmul.f32 %v534, %v1277
          %v1291 = vmul.f32 %v535, %v1277
          %v1292 = vmul.f32 %v536, %v1277
          %v1293 = vmul.f32 %v537, %v1277
          %v1294 = vmul.f32 %v538, %v1277
          %vm1295 = vcmask 64512
          %v1296 = vsel %vm1295, %v1279, 0.0
          %1297 = vadd.xlane.f32.xlu0 %v1296
          %v1298 = vpop.xlane.xlu0 %1297
          %v1299 = vsel %vm1295, %v1280, 0.0
          %1300 = vadd.xlane.f32.xlu0 %v1299
          %v1301 = vpop.xlane.xlu0 %1300
          %v1302 = vsel %vm1295, %v1281, 0.0
          %1303 = vadd.xlane.f32.xlu0 %v1302
          %v1304 = vpop.xlane.xlu0 %1303
          %v1305 = vsel %vm1295, %v1282, 0.0
          %1306 = vadd.xlane.f32.xlu0 %v1305
          %v1307 = vpop.xlane.xlu0 %1306
          %v1308 = vsel %vm1295, %v1283, 0.0
          %1309 = vadd.xlane.f32.xlu0 %v1308
          %v1310 = vpop.xlane.xlu0 %1309
          %v1311 = vsel %vm1295, %v1284, 0.0
          %1312 = vadd.xlane.f32.xlu0 %v1311
          %v1313 = vpop.xlane.xlu0 %1312
          %v1314 = vsel %vm1295, %v1285, 0.0
          %1315 = vadd.xlane.f32.xlu0 %v1314
          %v1316 = vpop.xlane.xlu0 %1315
          %v1317 = vsel %vm1295, %v1286, 0.0
          %1318 = vadd.xlane.f32.xlu0 %v1317
          %v1319 = vpop.xlane.xlu0 %1318
          %v1320 = vsel %vm1295, %v1287, 0.0
          %1321 = vadd.xlane.f32.xlu0 %v1320
          %v1322 = vpop.xlane.xlu0 %1321
          %v1323 = vsel %vm1295, %v1288, 0.0
          %1324 = vadd.xlane.f32.xlu0 %v1323
          %v1325 = vpop.xlane.xlu0 %1324
          %v1326 = vsel %vm1295, %v1289, 0.0
          %1327 = vadd.xlane.f32.xlu0 %v1326
          %v1328 = vpop.xlane.xlu0 %1327
          %v1329 = vsel %vm1295, %v1290, 0.0
          %1330 = vadd.xlane.f32.xlu0 %v1329
          %v1331 = vpop.xlane.xlu0 %1330
          %v1332 = vsel %vm1295, %v1291, 0.0
          %1333 = vadd.xlane.f32.xlu0 %v1332
          %v1334 = vpop.xlane.xlu0 %1333
          %v1335 = vsel %vm1295, %v1292, 0.0
          %1336 = vadd.xlane.f32.xlu0 %v1335
          %v1337 = vpop.xlane.xlu0 %1336
          %v1338 = vsel %vm1295, %v1293, 0.0
          %1339 = vadd.xlane.f32.xlu0 %v1338
          %v1340 = vpop.xlane.xlu0 %1339
          %v1341 = vsel %vm1295, %v1294, 0.0
          %1342 = vadd.xlane.f32.xlu0 %v1341
          %v1343 = vpop.xlane.xlu0 %1342
          %v1345 = vlaneseq
          %v1346 = vshrl.u32 %v1345, 7
          %v1347 = vsub.s32 0, %v1346
          %v1348 = vrot.slane %v1272, %v1347
          %v1350 = vmul.f32 %v523, %v1348
          %v1351 = vmul.f32 %v524, %v1348
          %v1352 = vmul.f32 %v525, %v1348
          %v1353 = vmul.f32 %v526, %v1348
          %v1354 = vmul.f32 %v527, %v1348
          %v1355 = vmul.f32 %v528, %v1348
          %v1356 = vmul.f32 %v529, %v1348
          %v1357 = vmul.f32 %v530, %v1348
          %v1358 = vmul.f32 %v531, %v1348
          %v1359 = vmul.f32 %v532, %v1348
          %v1360 = vmul.f32 %v533, %v1348
          %v1361 = vmul.f32 %v534, %v1348
          %v1362 = vmul.f32 %v535, %v1348
          %v1363 = vmul.f32 %v536, %v1348
          %v1364 = vmul.f32 %v537, %v1348
          %v1365 = vmul.f32 %v538, %v1348
          %v1366 = vsel %vm1295, %v1350, 0.0
          %1367 = vadd.xlane.f32.xlu0 %v1366
          %v1368 = vpop.xlane.xlu0 %1367
          %v1369 = vsel %vm1295, %v1351, 0.0
          %1370 = vadd.xlane.f32.xlu0 %v1369
          %v1371 = vpop.xlane.xlu0 %1370
          %v1372 = vsel %vm1295, %v1352, 0.0
          %1373 = vadd.xlane.f32.xlu0 %v1372
          %v1374 = vpop.xlane.xlu0 %1373
          %v1375 = vsel %vm1295, %v1353, 0.0
          %1376 = vadd.xlane.f32.xlu0 %v1375
          %v1377 = vpop.xlane.xlu0 %1376
          %v1378 = vsel %vm1295, %v1354, 0.0
          %1379 = vadd.xlane.f32.xlu0 %v1378
          %v1380 = vpop.xlane.xlu0 %1379
          %v1381 = vsel %vm1295, %v1355, 0.0
          %1382 = vadd.xlane.f32.xlu0 %v1381
          %v1383 = vpop.xlane.xlu0 %1382
          %v1384 = vsel %vm1295, %v1356, 0.0
          %1385 = vadd.xlane.f32.xlu0 %v1384
          %v1386 = vpop.xlane.xlu0 %1385
          %v1387 = vsel %vm1295, %v1357, 0.0
          %1388 = vadd.xlane.f32.xlu0 %v1387
          %v1389 = vpop.xlane.xlu0 %1388
          %v1390 = vsel %vm1295, %v1358, 0.0
          %1391 = vadd.xlane.f32.xlu0 %v1390
          %v1392 = vpop.xlane.xlu0 %1391
          %v1393 = vsel %vm1295, %v1359, 0.0
          %1394 = vadd.xlane.f32.xlu0 %v1393
          %v1395 = vpop.xlane.xlu0 %1394
          %v1396 = vsel %vm1295, %v1360, 0.0
          %1397 = vadd.xlane.f32.xlu0 %v1396
          %v1398 = vpop.xlane.xlu0 %1397
          %v1399 = vsel %vm1295, %v1361, 0.0
          %1400 = vadd.xlane.f32.xlu0 %v1399
          %v1401 = vpop.xlane.xlu0 %1400
          %v1402 = vsel %vm1295, %v1362, 0.0
          %1403 = vadd.xlane.f32.xlu0 %v1402
          %v1404 = vpop.xlane.xlu0 %1403
          %v1405 = vsel %vm1295, %v1363, 0.0
          %1406 = vadd.xlane.f32.xlu0 %v1405
          %v1407 = vpop.xlane.xlu0 %1406
          %v1408 = vsel %vm1295, %v1364, 0.0
          %1409 = vadd.xlane.f32.xlu0 %v1408
          %v1410 = vpop.xlane.xlu0 %1409
          %v1411 = vsel %vm1295, %v1365, 0.0
          %1412 = vadd.xlane.f32.xlu0 %v1411
          %v1413 = vpop.xlane.xlu0 %1412
          %v1414 = vsub.f32 %v838, %v1298
          %v1415 = vsub.f32 %v839, %v1301
          %v1416 = vsub.f32 %v840, %v1304
          %v1417 = vsub.f32 %v841, %v1307
          %v1418 = vsub.f32 %v842, %v1310
          %v1419 = vsub.f32 %v843, %v1313
          %v1420 = vsub.f32 %v844, %v1316
          %v1421 = vsub.f32 %v845, %v1319
          %v1422 = vsub.f32 %v846, %v1322
          %v1423 = vsub.f32 %v847, %v1325
          %v1424 = vsub.f32 %v848, %v1328
          %v1425 = vsub.f32 %v849, %v1331
          %v1426 = vsub.f32 %v850, %v1334
          %v1427 = vsub.f32 %v851, %v1337
          %v1428 = vsub.f32 %v852, %v1340
          %v1429 = vsub.f32 %v853, %v1343
          %v1430 = vmul.f32 %v1414, 1.442695
          %v1431 = vpow.pop %v1430
          %v1432 = vmul.f32 %v1415, 1.442695
          %v1433 = vpow.pop %v1432
          %v1434 = vmul.f32 %v1416, 1.442695
          %v1435 = vpow.pop %v1434
          %v1436 = vmul.f32 %v1417, 1.442695
          %v1437 = vpow.pop %v1436
          %v1438 = vmul.f32 %v1418, 1.442695
          %v1439 = vpow.pop %v1438
          %v1440 = vmul.f32 %v1419, 1.442695
          %v1441 = vpow.pop %v1440
          %v1442 = vmul.f32 %v1420, 1.442695
          %v1443 = vpow.pop %v1442
          %v1444 = vmul.f32 %v1421, 1.442695
          %v1445 = vpow.pop %v1444
          %v1446 = vmul.f32 %v1422, 1.442695
          %v1447 = vpow.pop %v1446
          %v1448 = vmul.f32 %v1423, 1.442695
          %v1449 = vpow.pop %v1448
          %v1450 = vmul.f32 %v1424, 1.442695
          %v1451 = vpow.pop %v1450
          %v1452 = vmul.f32 %v1425, 1.442695
          %v1453 = vpow.pop %v1452
          %v1454 = vmul.f32 %v1426, 1.442695
          %v1455 = vpow.pop %v1454
          %v1456 = vmul.f32 %v1427, 1.442695
          %v1457 = vpow.pop %v1456
          %v1458 = vmul.f32 %v1428, 1.442695
          %v1459 = vpow.pop %v1458
          %v1460 = vmul.f32 %v1429, 1.442695
          %v1461 = vpow.pop %v1460
          %v1462 = vmul.f32 %v1431, %v1368
          %v1463 = vmul.f32 %v1433, %v1371
          %v1464 = vmul.f32 %v1435, %v1374
          %v1465 = vmul.f32 %v1437, %v1377
          %v1466 = vmul.f32 %v1439, %v1380
          %v1467 = vmul.f32 %v1441, %v1383
          %v1468 = vmul.f32 %v1443, %v1386
          %v1469 = vmul.f32 %v1445, %v1389
          %v1470 = vmul.f32 %v1447, %v1392
          %v1471 = vmul.f32 %v1449, %v1395
          %v1472 = vmul.f32 %v1451, %v1398
          %v1473 = vmul.f32 %v1453, %v1401
          %v1474 = vmul.f32 %v1455, %v1404
          %v1475 = vmul.f32 %v1457, %v1407
          %v1476 = vmul.f32 %v1459, %v1410
          %v1477 = vmul.f32 %v1461, %v1413
          %s1478 = smul.u32 %s31, 128
          %s1479 = scalar_lea.vmem %s11, %s1478
          %vm1480 = vcmask 7168
          %1481 = vst.msk [vmem:[%s1479] sm:$0xff] %vm1480, %v1462
          %1482 = vst.msk [vmem:[%s1479 + $0x8] sm:$0xff] %vm1480, %v1463
          %1483 = vst.msk [vmem:[%s1479 + $0x10] sm:$0xff] %vm1480, %v1464
          %1484 = vst.msk [vmem:[%s1479 + $0x18] sm:$0xff] %vm1480, %v1465
          %1485 = vst.msk [vmem:[%s1479 + $0x20] sm:$0xff] %vm1480, %v1466
          %1486 = vst.msk [vmem:[%s1479 + $0x28] sm:$0xff] %vm1480, %v1467
          %1487 = vst.msk [vmem:[%s1479 + $0x30] sm:$0xff] %vm1480, %v1468
          %1488 = vst.msk [vmem:[%s1479 + $0x38] sm:$0xff] %vm1480, %v1469
          %1489 = vst.msk [vmem:[%s1479 + $0x40] sm:$0xff] %vm1480, %v1470
          %1490 = vst.msk [vmem:[%s1479 + $0x48] sm:$0xff] %vm1480, %v1471
          %1491 = vst.msk [vmem:[%s1479 + $0x50] sm:$0xff] %vm1480, %v1472
          %1492 = vst.msk [vmem:[%s1479 + $0x58] sm:$0xff] %vm1480, %v1473
          %1493 = vst.msk [vmem:[%s1479 + $0x60] sm:$0xff] %vm1480, %v1474
          %1494 = vst.msk [vmem:[%s1479 + $0x68] sm:$0xff] %vm1480, %v1475
          %1495 = vst.msk [vmem:[%s1479 + $0x70] sm:$0xff] %vm1480, %v1476
          %1496 = vst.msk [vmem:[%s1479 + $0x78] sm:$0xff] %vm1480, %v1477
          %v1497 = vld [vmem:[%s6] sm:$0xff]
          %v1498 = vld [vmem:[%s6 + $0x8] sm:$0xff]
          %v1499 = vld [vmem:[%s6 + $0x10] sm:$0xff]
          %v1500 = vld [vmem:[%s6 + $0x18] sm:$0xff]
          %v1501 = vld [vmem:[%s7] sm:$0x1]
          %v1503 = vlaneseq
          %v1504 = vshrl.u32 %v1503, 7
          %v1505 = vsub.s32 0, %v1504
          %v1506 = vrot.slane %v1501, %v1505
          %1508 = vmatprep.subr.mxu0 0.0
          %1509 = vmatpush1.msra.mxu0 %v1497
          %1510 = vmatprep.subr.mxu0 0.0
          %1511 = vmatpush1.msra.mxu0 %v1498
          %1512 = vmatprep.subr.mxu0 0.0
          %1513 = vmatpush1.msra.mxu0 %v1499
          %1514 = vmatprep.subr.mxu0 0.0
          %1515 = vmatpush1.msra.mxu0 %v1500
          %1516 = vmatprep.subr.mxu0 0.0
          %1517 = vmatpush1.msra.mxu0 0.0
          %1518 = vmatprep.subr.mxu0 0.0
          %1519 = vmatpush1.msra.mxu0 0.0
          %1520 = vmatprep.subr.mxu0 0.0
          %1521 = vmatpush1.msra.mxu0 0.0
          %1522 = vmatprep.subr.mxu0 0.0
          %1523 = vmatpush1.msra.mxu0 0.0
          %1524 = vmatprep.subr.mxu0 0.0
          %1525 = vmatpush1.msra.mxu0 0.0
          %1526 = vmatprep.subr.mxu0 0.0
          %1527 = vmatpush1.msra.mxu0 0.0
          %1528 = vmatprep.subr.mxu0 0.0
          %1529 = vmatpush1.msra.mxu0 0.0
          %1530 = vmatprep.subr.mxu0 0.0
          %1531 = vmatpush1.msra.mxu0 0.0
          %1532 = vmatprep.subr.mxu0 0.0
          %1533 = vmatpush1.msra.mxu0 0.0
          %1534 = vmatprep.subr.mxu0 0.0
          %1535 = vmatpush1.msra.mxu0 0.0
          %1536 = vmatprep.subr.mxu0 0.0
          %1537 = vmatpush1.msra.mxu0 0.0
          %1538 = vmatprep.subr.mxu0 0.0
          %1539 = vmatpush1.msra.mxu0 0.0
          %1540 = vmatprep.subr.mxu0 0.0
          %1541 = vmatpush1.msra.mxu0 0.0
          %1542 = vmatprep.subr.mxu0 0.0
          %1543 = vmatpush1.msra.mxu0 0.0
          %1544 = vmatprep.subr.mxu0 0.0
          %1545 = vmatpush1.msra.mxu0 0.0
          %1546 = vmatprep.subr.mxu0 0.0
          %1547 = vmatpush1.msra.mxu0 0.0
          %1548 = vmatprep.subr.mxu0 0.0
          %1549 = vmatpush1.msra.mxu0 0.0
          %1550 = vmatprep.subr.mxu0 0.0
          %1551 = vmatpush1.msra.mxu0 0.0
          %1552 = vmatprep.subr.mxu0 0.0
          %1553 = vmatpush1.msra.mxu0 0.0
          %1554 = vmatprep.subr.mxu0 0.0
          %1555 = vmatpush1.msra.mxu0 0.0
          %1556 = vmatprep.subr.mxu0 0.0
          %1557 = vmatpush1.msra.mxu0 0.0
          %1558 = vmatprep.subr.mxu0 0.0
          %1559 = vmatpush1.msra.mxu0 0.0
          %1560 = vmatprep.subr.mxu0 0.0
          %1561 = vmatpush1.msra.mxu0 0.0
          %1562 = vmatprep.subr.mxu0 0.0
          %1563 = vmatpush1.msra.mxu0 0.0
          %1564 = vmatprep.subr.mxu0 0.0
          %1565 = vmatpush1.msra.mxu0 0.0
          %1566 = vmatprep.subr.mxu0 0.0
          %1567 = vmatpush1.msra.mxu0 0.0
          %1568 = vmatprep.subr.mxu0 0.0
          %1569 = vmatpush1.msra.mxu0 0.0
          %1570 = vmatprep.subr.mxu0 0.0
          %1571 = vmatpush1.msra.mxu0 0.0
          %1572 = vmatprep.mubr.f32.mxu0 0.0
          %1573 = vmatmul.mubr.f32.gmra.mrb[0].mxu0 %v552
          %v1574 = vpop.f32.mrb[0].mxu0
          %v1575 = vadd.f32 %v1506, %v1574
          %v1576 = vpop.f32.mrb[0].mxu0
          %1577 = vmatprep.mubr.f32.mxu0 0.0
          %1578 = vmatmul.mubr.f32.gmra.mrb[0].mxu0 %v555
          %v1579 = vpop.f32.mrb[0].mxu0
          %v1580 = vadd.f32 %v1506, %v1579
          %v1581 = vpop.f32.mrb[0].mxu0
          %1582 = vmatprep.mubr.f32.mxu0 0.0
          %1583 = vmatmul.mubr.f32.gmra.mrb[0].mxu0 %v558
          %v1584 = vpop.f32.mrb[0].mxu0
          %v1585 = vadd.f32 %v1506, %v1584
          %v1586 = vpop.f32.mrb[0].mxu0
          %1587 = vmatprep.mubr.f32.mxu0 0.0
          %1588 = vmatmul.mubr.f32.gmra.mrb[0].mxu0 %v561
          %v1589 = vpop.f32.mrb[0].mxu0
          %v1590 = vadd.f32 %v1506, %v1589
          %v1591 = vpop.f32.mrb[0].mxu0
          %1592 = vmatprep.mubr.f32.mxu0 0.0
          %1593 = vmatmul.mubr.f32.gmra.mrb[0].mxu0 %v564
          %v1594 = vpop.f32.mrb[0].mxu0
          %v1595 = vadd.f32 %v1506, %v1594
          %v1596 = vpop.f32.mrb[0].mxu0
          %1597 = vmatprep.mubr.f32.mxu0 0.0
          %1598 = vmatmul.mubr.f32.gmra.mrb[0].mxu0 %v567
          %v1599 = vpop.f32.mrb[0].mxu0
          %v1600 = vadd.f32 %v1506, %v1599
          %v1601 = vpop.f32.mrb[0].mxu0
          %1602 = vmatprep.mubr.f32.mxu0 0.0
          %1603 = vmatmul.mubr.f32.gmra.mrb[0].mxu0 %v570
          %v1604 = vpop.f32.mrb[0].mxu0
          %v1605 = vadd.f32 %v1506, %v1604
          %v1606 = vpop.f32.mrb[0].mxu0
          %1607 = vmatprep.mubr.f32.mxu0 0.0
          %1608 = vmatmul.mubr.f32.gmra.mrb[0].mxu0 %v573
          %v1609 = vpop.f32.mrb[0].mxu0
          %v1610 = vadd.f32 %v1506, %v1609
          %v1611 = vpop.f32.mrb[0].mxu0
          %1612 = vmatprep.mubr.f32.mxu0 0.0
          %1613 = vmatmul.mubr.f32.gmra.mrb[0].mxu0 %v576
          %v1614 = vpop.f32.mrb[0].mxu0
          %v1615 = vadd.f32 %v1506, %v1614
          %v1616 = vpop.f32.mrb[0].mxu0
          %1617 = vmatprep.mubr.f32.mxu0 0.0
          %1618 = vmatmul.mubr.f32.gmra.mrb[0].mxu0 %v579
          %v1619 = vpop.f32.mrb[0].mxu0
          %v1620 = vadd.f32 %v1506, %v1619
          %v1621 = vpop.f32.mrb[0].mxu0
          %1622 = vmatprep.mubr.f32.mxu0 0.0
          %1623 = vmatmul.mubr.f32.gmra.mrb[0].mxu0 %v582
          %v1624 = vpop.f32.mrb[0].mxu0
          %v1625 = vadd.f32 %v1506, %v1624
          %v1626 = vpop.f32.mrb[0].mxu0
          %1627 = vmatprep.mubr.f32.mxu0 0.0
          %1628 = vmatmul.mubr.f32.gmra.mrb[0].mxu0 %v585
          %v1629 = vpop.f32.mrb[0].mxu0
          %v1630 = vadd.f32 %v1506, %v1629
          %v1631 = vpop.f32.mrb[0].mxu0
          %1632 = vmatprep.mubr.f32.mxu0 0.0
          %1633 = vmatmul.mubr.f32.gmra.mrb[0].mxu0 %v588
          %v1634 = vpop.f32.mrb[0].mxu0
          %v1635 = vadd.f32 %v1506, %v1634
          %v1636 = vpop.f32.mrb[0].mxu0
          %1637 = vmatprep.mubr.f32.mxu0 0.0
          %1638 = vmatmul.mubr.f32.gmra.mrb[0].mxu0 %v591
          %v1639 = vpop.f32.mrb[0].mxu0
          %v1640 = vadd.f32 %v1506, %v1639
          %v1641 = vpop.f32.mrb[0].mxu0
          %1642 = vmatprep.mubr.f32.mxu0 0.0
          %1643 = vmatmul.mubr.f32.gmra.mrb[0].mxu0 %v594
          %v1644 = vpop.f32.mrb[0].mxu0
          %v1645 = vadd.f32 %v1506, %v1644
          %v1646 = vpop.f32.mrb[0].mxu0
          %1647 = vmatprep.mubr.f32.mxu0 0.0
          %1648 = vmatmul.mubr.f32.gmra.mrb[0].mxu0 %v597
          %v1649 = vpop.f32.mrb[0].mxu0
          %v1650 = vadd.f32 %v1506, %v1649
          %v1651 = vpop.f32.mrb[0].mxu0
          %1652 = vdwg.mxu0
          %v1653 = vmax.f32 %v1575, 0.0
          %v1654 = vmax.f32 %v1580, 0.0
          %v1655 = vmax.f32 %v1585, 0.0
          %v1656 = vmax.f32 %v1590, 0.0
          %v1657 = vmax.f32 %v1595, 0.0
          %v1658 = vmax.f32 %v1600, 0.0
          %v1659 = vmax.f32 %v1605, 0.0
          %v1660 = vmax.f32 %v1610, 0.0
          %v1661 = vmax.f32 %v1615, 0.0
          %v1662 = vmax.f32 %v1620, 0.0
          %v1663 = vmax.f32 %v1625, 0.0
          %v1664 = vmax.f32 %v1630, 0.0
          %v1665 = vmax.f32 %v1635, 0.0
          %v1666 = vmax.f32 %v1640, 0.0
          %v1667 = vmax.f32 %v1645, 0.0
          %v1668 = vmax.f32 %v1650, 0.0
          %v1669 = vld [vmem:[%s8] sm:$0xff]
          %v1670 = vld [vmem:[%s8 + $0x8] sm:$0xff]
          %v1671 = vld [vmem:[%s8 + $0x10] sm:$0xff]
          %v1672 = vld [vmem:[%s8 + $0x18] sm:$0xff]
          %v1673 = vld [vmem:[%s9] sm:$0x1]
          %v1675 = vlaneseq
          %v1676 = vshrl.u32 %v1675, 7
          %v1677 = vsub.s32 0, %v1676
          %v1678 = vrot.slane %v1673, %v1677
          %v1681 = vsel %vm550, %v1653, 0
          %v1684 = vsel %vm550, %v1654, 0
          %v1687 = vsel %vm550, %v1655, 0
          %v1690 = vsel %vm550, %v1656, 0
          %v1693 = vsel %vm550, %v1657, 0
          %v1696 = vsel %vm550, %v1658, 0
          %v1699 = vsel %vm550, %v1659, 0
          %v1702 = vsel %vm550, %v1660, 0
          %v1705 = vsel %vm550, %v1661, 0
          %v1708 = vsel %vm550, %v1662, 0
          %v1711 = vsel %vm550, %v1663, 0
          %v1714 = vsel %vm550, %v1664, 0
          %v1717 = vsel %vm550, %v1665, 0
          %v1720 = vsel %vm550, %v1666, 0
          %v1723 = vsel %vm550, %v1667, 0
          %v1726 = vsel %vm550, %v1668, 0
          %1728 = vmatprep.subr.mxu0 0.0
          %1729 = vmatpush1.msra.mxu0 %v1669
          %1730 = vmatprep.subr.mxu0 0.0
          %1731 = vmatpush1.msra.mxu0 %v1670
          %1732 = vmatprep.subr.mxu0 0.0
          %1733 = vmatpush1.msra.mxu0 %v1671
          %1734 = vmatprep.subr.mxu0 0.0
          %1735 = vmatpush1.msra.mxu0 %v1672
          %1736 = vmatprep.subr.mxu0 0.0
          %1737 = vmatpush1.msra.mxu0 0.0
          %1738 = vmatprep.subr.mxu0 0.0
          %1739 = vmatpush1.msra.mxu0 0.0
          %1740 = vmatprep.subr.mxu0 0.0
          %1741 = vmatpush1.msra.mxu0 0.0
          %1742 = vmatprep.subr.mxu0 0.0
          %1743 = vmatpush1.msra.mxu0 0.0
          %1744 = vmatprep.subr.mxu0 0.0
          %1745 = vmatpush1.msra.mxu0 0.0
          %1746 = vmatprep.subr.mxu0 0.0
          %1747 = vmatpush1.msra.mxu0 0.0
          %1748 = vmatprep.subr.mxu0 0.0
          %1749 = vmatpush1.msra.mxu0 0.0
          %1750 = vmatprep.subr.mxu0 0.0
          %1751 = vmatpush1.msra.mxu0 0.0
          %1752 = vmatprep.subr.mxu0 0.0
          %1753 = vmatpush1.msra.mxu0 0.0
          %1754 = vmatprep.subr.mxu0 0.0
          %1755 = vmatpush1.msra.mxu0 0.0
          %1756 = vmatprep.subr.mxu0 0.0
          %1757 = vmatpush1.msra.mxu0 0.0
          %1758 = vmatprep.subr.mxu0 0.0
          %1759 = vmatpush1.msra.mxu0 0.0
          %1760 = vmatprep.subr.mxu0 0.0
          %1761 = vmatpush1.msra.mxu0 0.0
          %1762 = vmatprep.subr.mxu0 0.0
          %1763 = vmatpush1.msra.mxu0 0.0
          %1764 = vmatprep.subr.mxu0 0.0
          %1765 = vmatpush1.msra.mxu0 0.0
          %1766 = vmatprep.subr.mxu0 0.0
          %1767 = vmatpush1.msra.mxu0 0.0
          %1768 = vmatprep.subr.mxu0 0.0
          %1769 = vmatpush1.msra.mxu0 0.0
          %1770 = vmatprep.subr.mxu0 0.0
          %1771 = vmatpush1.msra.mxu0 0.0
          %1772 = vmatprep.subr.mxu0 0.0
          %1773 = vmatpush1.msra.mxu0 0.0
          %1774 = vmatprep.subr.mxu0 0.0
          %1775 = vmatpush1.msra.mxu0 0.0
          %1776 = vmatprep.subr.mxu0 0.0
          %1777 = vmatpush1.msra.mxu0 0.0
          %1778 = vmatprep.subr.mxu0 0.0
          %1779 = vmatpush1.msra.mxu0 0.0
          %1780 = vmatprep.subr.mxu0 0.0
          %1781 = vmatpush1.msra.mxu0 0.0
          %1782 = vmatprep.subr.mxu0 0.0
          %1783 = vmatpush1.msra.mxu0 0.0
          %1784 = vmatprep.subr.mxu0 0.0
          %1785 = vmatpush1.msra.mxu0 0.0
          %1786 = vmatprep.subr.mxu0 0.0
          %1787 = vmatpush1.msra.mxu0 0.0
          %1788 = vmatprep.subr.mxu0 0.0
          %1789 = vmatpush1.msra.mxu0 0.0
          %1790 = vmatprep.subr.mxu0 0.0
          %1791 = vmatpush1.msra.mxu0 0.0
          %1792 = vmatprep.mubr.f32.mxu0 0.0
          %1793 = vmatmul.mubr.f32.gmra.mrb[0].mxu0 %v1681
          %v1794 = vpop.f32.mrb[0].mxu0
          %v1795 = vadd.f32 %v1678, %v1794
          %v1796 = vpop.f32.mrb[0].mxu0
          %1797 = vmatprep.mubr.f32.mxu0 0.0
          %1798 = vmatmul.mubr.f32.gmra.mrb[0].mxu0 %v1684
          %v1799 = vpop.f32.mrb[0].mxu0
          %v1800 = vadd.f32 %v1678, %v1799
          %v1801 = vpop.f32.mrb[0].mxu0
          %1802 = vmatprep.mubr.f32.mxu0 0.0
          %1803 = vmatmul.mubr.f32.gmra.mrb[0].mxu0 %v1687
          %v1804 = vpop.f32.mrb[0].mxu0
          %v1805 = vadd.f32 %v1678, %v1804
          %v1806 = vpop.f32.mrb[0].mxu0
          %1807 = vmatprep.mubr.f32.mxu0 0.0
          %1808 = vmatmul.mubr.f32.gmra.mrb[0].mxu0 %v1690
          %v1809 = vpop.f32.mrb[0].mxu0
          %v1810 = vadd.f32 %v1678, %v1809
          %v1811 = vpop.f32.mrb[0].mxu0
          %1812 = vmatprep.mubr.f32.mxu0 0.0
          %1813 = vmatmul.mubr.f32.gmra.mrb[0].mxu0 %v1693
          %v1814 = vpop.f32.mrb[0].mxu0
          %v1815 = vadd.f32 %v1678, %v1814
          %v1816 = vpop.f32.mrb[0].mxu0
          %1817 = vmatprep.mubr.f32.mxu0 0.0
          %1818 = vmatmul.mubr.f32.gmra.mrb[0].mxu0 %v1696
          %v1819 = vpop.f32.mrb[0].mxu0
          %v1820 = vadd.f32 %v1678, %v1819
          %v1821 = vpop.f32.mrb[0].mxu0
          %1822 = vmatprep.mubr.f32.mxu0 0.0
          %1823 = vmatmul.mubr.f32.gmra.mrb[0].mxu0 %v1699
          %v1824 = vpop.f32.mrb[0].mxu0
          %v1825 = vadd.f32 %v1678, %v1824
          %v1826 = vpop.f32.mrb[0].mxu0
          %1827 = vmatprep.mubr.f32.mxu0 0.0
          %1828 = vmatmul.mubr.f32.gmra.mrb[0].mxu0 %v1702
          %v1829 = vpop.f32.mrb[0].mxu0
          %v1830 = vadd.f32 %v1678, %v1829
          %v1831 = vpop.f32.mrb[0].mxu0
          %1832 = vmatprep.mubr.f32.mxu0 0.0
          %1833 = vmatmul.mubr.f32.gmra.mrb[0].mxu0 %v1705
          %v1834 = vpop.f32.mrb[0].mxu0
          %v1835 = vadd.f32 %v1678, %v1834
          %v1836 = vpop.f32.mrb[0].mxu0
          %1837 = vmatprep.mubr.f32.mxu0 0.0
          %1838 = vmatmul.mubr.f32.gmra.mrb[0].mxu0 %v1708
          %v1839 = vpop.f32.mrb[0].mxu0
          %v1840 = vadd.f32 %v1678, %v1839
          %v1841 = vpop.f32.mrb[0].mxu0
          %1842 = vmatprep.mubr.f32.mxu0 0.0
          %1843 = vmatmul.mubr.f32.gmra.mrb[0].mxu0 %v1711
          %v1844 = vpop.f32.mrb[0].mxu0
          %v1845 = vadd.f32 %v1678, %v1844
          %v1846 = vpop.f32.mrb[0].mxu0
          %1847 = vmatprep.mubr.f32.mxu0 0.0
          %1848 = vmatmul.mubr.f32.gmra.mrb[0].mxu0 %v1714
          %v1849 = vpop.f32.mrb[0].mxu0
          %v1850 = vadd.f32 %v1678, %v1849
          %v1851 = vpop.f32.mrb[0].mxu0
          %1852 = vmatprep.mubr.f32.mxu0 0.0
          %1853 = vmatmul.mubr.f32.gmra.mrb[0].mxu0 %v1717
          %v1854 = vpop.f32.mrb[0].mxu0
          %v1855 = vadd.f32 %v1678, %v1854
          %v1856 = vpop.f32.mrb[0].mxu0
          %1857 = vmatprep.mubr.f32.mxu0 0.0
          %1858 = vmatmul.mubr.f32.gmra.mrb[0].mxu0 %v1720
          %v1859 = vpop.f32.mrb[0].mxu0
          %v1860 = vadd.f32 %v1678, %v1859
          %v1861 = vpop.f32.mrb[0].mxu0
          %1862 = vmatprep.mubr.f32.mxu0 0.0
          %1863 = vmatmul.mubr.f32.gmra.mrb[0].mxu0 %v1723
          %v1864 = vpop.f32.mrb[0].mxu0
          %v1865 = vadd.f32 %v1678, %v1864
          %v1866 = vpop.f32.mrb[0].mxu0
          %1867 = vmatprep.mubr.f32.mxu0 0.0
          %1868 = vmatmul.mubr.f32.gmra.mrb[0].mxu0 %v1726
          %v1869 = vpop.f32.mrb[0].mxu0
          %v1870 = vadd.f32 %v1678, %v1869
          %v1871 = vpop.f32.mrb[0].mxu0
          %1872 = vdwg.mxu0
          %1874 = vset.pattern.permute.xlu0 0
          %1875 = vperm.xlu0 %1874, %v1462
          %v1876 = vpop.permute.xlu0 %1875
          %1879 = vset.pattern.permute.xlu0 0
          %1880 = vperm.xlu0 %1879, %v1463
          %v1881 = vpop.permute.xlu0 %1880
          %1884 = vset.pattern.permute.xlu0 0
          %1885 = vperm.xlu0 %1884, %v1464
          %v1886 = vpop.permute.xlu0 %1885
          %1889 = vset.pattern.permute.xlu0 0
          %1890 = vperm.xlu0 %1889, %v1465
          %v1891 = vpop.permute.xlu0 %1890
          %1894 = vset.pattern.permute.xlu0 0
          %1895 = vperm.xlu0 %1894, %v1466
          %v1896 = vpop.permute.xlu0 %1895
          %1899 = vset.pattern.permute.xlu0 0
          %1900 = vperm.xlu0 %1899, %v1467
          %v1901 = vpop.permute.xlu0 %1900
          %1904 = vset.pattern.permute.xlu0 0
          %1905 = vperm.xlu0 %1904, %v1468
          %v1906 = vpop.permute.xlu0 %1905
          %1909 = vset.pattern.permute.xlu0 0
          %1910 = vperm.xlu0 %1909, %v1469
          %v1911 = vpop.permute.xlu0 %1910
          %1914 = vset.pattern.permute.xlu0 0
          %1915 = vperm.xlu0 %1914, %v1470
          %v1916 = vpop.permute.xlu0 %1915
          %1919 = vset.pattern.permute.xlu0 0
          %1920 = vperm.xlu0 %1919, %v1471
          %v1921 = vpop.permute.xlu0 %1920
          %1924 = vset.pattern.permute.xlu0 0
          %1925 = vperm.xlu0 %1924, %v1472
          %v1926 = vpop.permute.xlu0 %1925
          %1929 = vset.pattern.permute.xlu0 0
          %1930 = vperm.xlu0 %1929, %v1473
          %v1931 = vpop.permute.xlu0 %1930
          %1934 = vset.pattern.permute.xlu0 0
          %1935 = vperm.xlu0 %1934, %v1474
          %v1936 = vpop.permute.xlu0 %1935
          %1939 = vset.pattern.permute.xlu0 0
          %1940 = vperm.xlu0 %1939, %v1475
          %v1941 = vpop.permute.xlu0 %1940
          %1944 = vset.pattern.permute.xlu0 0
          %1945 = vperm.xlu0 %1944, %v1476
          %v1946 = vpop.permute.xlu0 %1945
          %1949 = vset.pattern.permute.xlu0 0
          %1950 = vperm.xlu0 %1949, %v1477
          %v1951 = vpop.permute.xlu0 %1950
          %v1953 = vmul.f32 %v1876, %v1795
          %v1954 = vmul.f32 %v1881, %v1800
          %v1955 = vmul.f32 %v1886, %v1805
          %v1956 = vmul.f32 %v1891, %v1810
          %v1957 = vmul.f32 %v1896, %v1815
          %v1958 = vmul.f32 %v1901, %v1820
          %v1959 = vmul.f32 %v1906, %v1825
          %v1960 = vmul.f32 %v1911, %v1830
          %v1961 = vmul.f32 %v1916, %v1835
          %v1962 = vmul.f32 %v1921, %v1840
          %v1963 = vmul.f32 %v1926, %v1845
          %v1964 = vmul.f32 %v1931, %v1850
          %v1965 = vmul.f32 %v1936, %v1855
          %v1966 = vmul.f32 %v1941, %v1860
          %v1967 = vmul.f32 %v1946, %v1865
          %v1968 = vmul.f32 %v1951, %v1870
          %1969 = vxpose.xlu0.b32.start [1/16] %v523, 128
          %1970 = vxpose.xlu0.b32.cont [2/16] %v524, 128
          %1971 = vxpose.xlu0.b32.cont [3/16] %v525, 128
          %1972 = vxpose.xlu0.b32.cont [4/16] %v526, 128
          %1973 = vxpose.xlu0.b32.cont [5/16] %v527, 128
          %1974 = vxpose.xlu0.b32.cont [6/16] %v528, 128
          %1975 = vxpose.xlu0.b32.cont [7/16] %v529, 128
          %1976 = vxpose.xlu0.b32.cont [8/16] %v530, 128
          %1977 = vxpose.xlu0.b32.cont [9/16] %v531, 128
          %1978 = vxpose.xlu0.b32.cont [10/16] %v532, 128
          %1979 = vxpose.xlu0.b32.cont [11/16] %v533, 128
          %1980 = vxpose.xlu0.b32.cont [12/16] %v534, 128
          %1981 = vxpose.xlu0.b32.cont [13/16] %v535, 128
          %1982 = vxpose.xlu0.b32.cont [14/16] %v536, 128
          %1983 = vxpose.xlu0.b32.cont [15/16] %v537, 128
          %1984 = vxpose.xlu0.b32.end [16/16] %v538, 128
          %v1985 = vpop.trf.xlu0
          %v1986 = vpop.trf.xlu0
          %v1987 = vpop.trf.xlu0
          %v1988 = vpop.trf.xlu0
          %v1989 = vpop.trf.xlu0
          %v1990 = vpop.trf.xlu0
          %v1991 = vpop.trf.xlu0
          %v1992 = vpop.trf.xlu0
          %v1993 = vpop.trf.xlu0
          %v1994 = vpop.trf.xlu0
          %v1995 = vpop.trf.xlu0
          %v1996 = vpop.trf.xlu0
          %v1997 = vpop.trf.xlu0
          %v1998 = vpop.trf.xlu0
          %v1999 = vpop.trf.xlu0
          %v2000 = vpop.trf.xlu0
          %2001 = vmatprep.subr.mxu0 0.0
          %2002 = vmatpush1.msra.mxu0 %v1953
          %2003 = vmatprep.subr.mxu0 0.0
          %2004 = vmatpush1.msra.mxu0 %v1954
          %2005 = vmatprep.subr.mxu0 0.0
          %2006 = vmatpush1.msra.mxu0 %v1955
          %2007 = vmatprep.subr.mxu0 0.0
          %2008 = vmatpush1.msra.mxu0 %v1956
          %2009 = vmatprep.subr.mxu0 0.0
          %2010 = vmatpush1.msra.mxu0 %v1957
          %2011 = vmatprep.subr.mxu0 0.0
          %2012 = vmatpush1.msra.mxu0 %v1958
          %2013 = vmatprep.subr.mxu0 0.0
          %2014 = vmatpush1.msra.mxu0 %v1959
          %2015 = vmatprep.subr.mxu0 0.0
          %2016 = vmatpush1.msra.mxu0 %v1960
          %2017 = vmatprep.subr.mxu0 0.0
          %2018 = vmatpush1.msra.mxu0 %v1961
          %2019 = vmatprep.subr.mxu0 0.0
          %2020 = vmatpush1.msra.mxu0 %v1962
          %2021 = vmatprep.subr.mxu0 0.0
          %2022 = vmatpush1.msra.mxu0 %v1963
          %2023 = vmatprep.subr.mxu0 0.0
          %2024 = vmatpush1.msra.mxu0 %v1964
          %2025 = vmatprep.subr.mxu0 0.0
          %2026 = vmatpush1.msra.mxu0 %v1965
          %2027 = vmatprep.subr.mxu0 0.0
          %2028 = vmatpush1.msra.mxu0 %v1966
          %2029 = vmatprep.subr.mxu0 0.0
          %2030 = vmatpush1.msra.mxu0 %v1967
          %2031 = vmatprep.subr.mxu0 0.0
          %2032 = vmatpush1.msra.mxu0 %v1968
          %2033 = vmatprep.subr.mxu0 0.0
          %2034 = vmatpush1.msra.mxu0 0.0
          %2035 = vmatprep.subr.mxu0 0.0
          %2036 = vmatpush1.msra.mxu0 0.0
          %2037 = vmatprep.subr.mxu0 0.0
          %2038 = vmatpush1.msra.mxu0 0.0
          %2039 = vmatprep.subr.mxu0 0.0
          %2040 = vmatpush1.msra.mxu0 0.0
          %2041 = vmatprep.subr.mxu0 0.0
          %2042 = vmatpush1.msra.mxu0 0.0
          %2043 = vmatprep.subr.mxu0 0.0
          %2044 = vmatpush1.msra.mxu0 0.0
          %2045 = vmatprep.subr.mxu0 0.0
          %2046 = vmatpush1.msra.mxu0 0.0
          %2047 = vmatprep.subr.mxu0 0.0
          %2048 = vmatpush1.msra.mxu0 0.0
          %2049 = vmatprep.subr.mxu0 0.0
          %2050 = vmatpush1.msra.mxu0 0.0
          %2051 = vmatprep.subr.mxu0 0.0
          %2052 = vmatpush1.msra.mxu0 0.0
          %2053 = vmatprep.subr.mxu0 0.0
          %2054 = vmatpush1.msra.mxu0 0.0
          %2055 = vmatprep.subr.mxu0 0.0
          %2056 = vmatpush1.msra.mxu0 0.0
          %2057 = vmatprep.subr.mxu0 0.0
          %2058 = vmatpush1.msra.mxu0 0.0
          %2059 = vmatprep.subr.mxu0 0.0
          %2060 = vmatpush1.msra.mxu0 0.0
          %2061 = vmatprep.subr.mxu0 0.0
          %2062 = vmatpush1.msra.mxu0 0.0
          %2063 = vmatprep.subr.mxu0 0.0
          %2064 = vmatpush1.msra.mxu0 0.0
          %2065 = vmatprep.mubr.f32.mxu0 0.0
          %2066 = vmatmul.mubr.f32.gmra.mrb[0].mxu0 %v1985
          %v2067 = vpop.f32.mrb[0].mxu0
          %v2068 = vadd.f32 0.0, %v2067
          %v2069 = vpop.f32.mrb[0].mxu0
          %2070 = vdwg.mxu0
          %v2071 = vld [vmem:[#allocation5] sm:$0xff]
          %v2072 = vadd.f32 %v2071, %v2068
          %2073 = vst [vmem:[#allocation5] sm:$0xff] %v2072
        $region72: #{tpu_custom_call.1} parent=59 // pred_fallthru
          _
        // Predicated region
        $region73: #{tpu_custom_call.1} parent=59 // pred_check
          %p2074 = pneg %p271
        $region74: #{tpu_custom_call.1} parent=59 // pred_check_branch
          %2076 = sbr.rel (%p2074) target = $region76
        $region75: #{tpu_custom_call.1} parent=59 // pred_region
          %s2078 = ssub.s32 128, 128
          %2079 = vsyncadd [#allocation6], %s2078
          %s2081 = sshll.u32 [#allocation5], 4
          %s2082 = int_to_ptr.vmem [resolvable:$true] %s2081
          %2084 = dma.vmem_to_hbm [thread:$0]  %s2082, 128, %s10, [#allocation6]
        $region76: #{tpu_custom_call.1} parent=59 // pred_fallthru
          _
        // Predicated region
        $region77: #{tpu_custom_call.1} parent=59 // pred_check
          %p2085 = pneg %p292
        $region78: #{tpu_custom_call.1} parent=59 // pred_check_branch
          %2087 = sbr.rel (%p2085) target = $region80
        $region79: #{tpu_custom_call.1} parent=59 // pred_region
          _
        $region80: #{tpu_custom_call.1} parent=59 // pred_fallthru
          _
        // Predicated region
        $region81: #{tpu_custom_call.1} parent=59 // pred_check
          %p2088 = pneg %p271
        $region82: #{tpu_custom_call.1} parent=59 // pred_check_branch
          %2090 = sbr.rel (%p2088) target = $region84
        $region83: #{tpu_custom_call.1} parent=59 // pred_region
          %2091 = dma.done [#allocation6], 128
        $region84: #{tpu_custom_call.1} parent=59 // pred_fallthru
          _
        // Predicated region
        $region85: #{tpu_custom_call.1} parent=59 // pred_check
          %p2092 = pneg %p292
        $region86: #{tpu_custom_call.1} parent=59 // pred_check_branch
          %2094 = sbr.rel (%p2092) target = $region88
        $region87: #{tpu_custom_call.1} parent=59 // pred_region
          _
        $region88: #{tpu_custom_call.1} parent=59 // pred_fallthru
          _
      $region60: #{tpu_custom_call.1} parent=5 // pred_fallthru
        _
      %p2095 = scmp.le.s32.totalorder 2, %s21
      // Predicated region
      $region89: #{tpu_custom_call.1} parent=5 // pred_check
        %p2096 = pneg %p2095
      $region90: #{tpu_custom_call.1} parent=5 // pred_check_branch
        %2098 = sbr.rel (%p2096) target = $region92
      $region91: #{tpu_custom_call.1} parent=5 // pred_region
        %s2099 = ssub.s32 %s21, 2
      $region92: #{tpu_custom_call.1} parent=5 // pred_fallthru
        _
    $region6: #{tpu_custom_call.1} parent=1 // loop_footer
      %s25 = sadd.s32 1, %s21
    $region7: #{tpu_custom_call.1} parent=1 // loop_footer_branch
      %20 = sbr.rel target = $region3
    $region8: #{tpu_custom_call.1} parent=1 // loop_exit
      _
    %2100 = vsyncpa [#allocation6], 1
    %s2101 = scalar_lea.sflag [#allocation6], 1
    %2102 = vsyncpa %s2101, 1

</llo_original>
